<compile_context>
chip_gen: v6e
topology: v6e:2x2x1
jax: 0.10.0
libtpu: 0.0.40
codegen_flags: <defaults>
</compile_context>

<pallas_src>
import functools

import jax
import jax.numpy as jnp
from jax.experimental import pallas as pl
from jax.experimental.pallas import tpu as pltpu


def _relu(x):
    return jnp.maximum(x, 0.0)


def dmpnn_kernel(steps, mxu_dtype,
                 xe_ref, x_ref, dst_col_ref, dst_row_ref, src_row_ref, batch_ref,
                 wi_ref, bi_ref, wh1_ref, bh1_ref, wh2_ref, bh2_ref,
                 wf_x_ref, wf_m_ref, bf_ref, gamma_ref, beta_ref, wo_ref,
                 out_ref):
    f32 = jnp.float32
    E = xe_ref.shape[0]
    N = x_ref.shape[0]
    G = out_ref.shape[0]

    def mdot(a, b):
        # MXU matmul: operands optionally bf16, accumulation always f32.
        return jnp.dot(a, b, preferred_element_type=f32)

    # --- structural 0/1 matrices, built in-kernel (VPU compares; zero HBM) ---
    col_n = jax.lax.broadcasted_iota(jnp.int32, (E, N), 1)      # node id per lane
    row_n = jax.lax.broadcasted_iota(jnp.int32, (N, E), 0)      # node id per sublane
    gdst = (dst_col_ref[...] == col_n).astype(f32).astype(mxu_dtype)    # [E,N] gather @ dst
    gdst_t = (row_n == dst_row_ref[...]).astype(f32).astype(mxu_dtype)  # [N,E] scatter_add over dst
    gsrc_t = (row_n == src_row_ref[...]).astype(f32).astype(mxu_dtype)  # [N,E] scatter_add over src

    # Loop-invariant weights: read/cast once, hoisted out of the steps loop.
    wh1 = wh1_ref[...].astype(mxu_dtype)
    wh2 = wh2_ref[...].astype(mxu_dtype)
    bh1 = bh1_ref[...]
    bh2 = bh2_ref[...]

    # --- h0 = ReLU(dense_init(cat(x[src], edge_attr))) ----------------------
    h0 = _relu(mdot(xe_ref[...].astype(mxu_dtype), wi_ref[...].astype(mxu_dtype))
               + bi_ref[...])                                           # [E,H]

    # --- message passing -----------------------------------------------------
    def mp_step(h):
        s_nodes = mdot(gdst_t, h.astype(mxu_dtype))           # [N,H] scatter_add over dst
        m = mdot(gdst, s_nodes.astype(mxu_dtype)) - h         # [E,H] gather at dst, minus self
        t = _relu(mdot(m.astype(mxu_dtype), wh1) + bh1)
        t = mdot(t.astype(mxu_dtype), wh2) + bh2
        return _relu(h0 + t)

    if steps <= 4:
        # Small step count: trace-time unroll (full LLO scheduling visibility).
        h = h0
        for _ in range(steps):
            h = mp_step(h)
    else:
        # Larger step count: fori_loop bounds the live [E,H] temporaries.
        h = jax.lax.fori_loop(0, steps, lambda _, hh: mp_step(hh), h0)

    # --- scatter_add over src (dim_size = N) + dense_final -------------------
    m_nodes = mdot(gsrc_t, h.astype(mxu_dtype))                         # [N,H]
    hf = _relu(mdot(x_ref[...].astype(mxu_dtype), wf_x_ref[...].astype(mxu_dtype))
               + mdot(m_nodes.astype(mxu_dtype), wf_m_ref[...].astype(mxu_dtype))
               + bf_ref[...])                                           # [N,H]

    # --- LayerNorm (two-pass, centered variance — matches reference) + ReLU ---
    mean = jnp.mean(hf, axis=-1, keepdims=True)
    cen = hf - mean
    var = jnp.mean(cen * cen, axis=-1, keepdims=True)
    hn = _relu(cen * jax.lax.rsqrt(var + 1e-5) * gamma_ref[...] + beta_ref[...])
    # Dropout: inference semantics -> identity.

    # --- global mean pool + final dense (bias=False): tiny, kept f32 ---------
    row_g = jax.lax.broadcasted_iota(jnp.int32, (G, N), 0)
    pool = (row_g == batch_ref[...]).astype(f32)                        # [G,N]
    counts = jnp.maximum(jnp.sum(pool, axis=1, keepdims=True), 1.0)
    pooled = jnp.dot(pool, hn, preferred_element_type=f32) / counts     # [G,H]
    # TODO(synk): pad to a lane-dense (multiple-of-128) slab if output_size grows.
    out_ref[...] = jnp.dot(pooled, wo_ref[...], preferred_element_type=f32)


def _vmem_limit_bytes():
    # Generation-aware scoped-VMEM budget: ~3/4 of physical VMEM
    # (≈48 MiB on v7x's 64 MiB part, ≈96 MiB on v5e/v6e's 128 MiB parts),
    # leaving headroom for compiler-internal scratch.
    cap = 64 * 1024 * 1024          # conservative fallback (v7x physical VMEM)
    try:
        cap = int(pltpu.get_tpu_info().vmem_capacity_bytes)
    except Exception:
        pass
    return (cap * 3) // 4


def hqfx_dmpnn_pallas(x, edge_attr, edge_index, batch, num_graphs, params,
                      steps, *, mxu_bf16=False):
    f32 = jnp.float32
    i32 = jnp.int32
    mxu_dtype = jnp.bfloat16 if mxu_bf16 else f32

    N, Fin = x.shape
    E, Fe = edge_attr.shape
    G = int(num_graphs)
    H = params["wh1"].shape[0]
    out_size = params["wo"].shape[0]

    x = x.astype(f32)
    edge_attr = edge_attr.astype(f32)
    src = edge_index[0].astype(i32)
    dst = edge_index[1].astype(i32)

    # Plain-XLA glue: gather x[src] (pure data movement, not MXU work) and
    # pre-concatenate with edge_attr so dense_init is a single MXU pass.
    xe = jnp.concatenate([x[src], edge_attr], axis=1)                 # [E, Fin+Fe]

    # Only the tiny int32 index vectors are shipped to the kernel; the [E,N]
    # structural matrices are built in-kernel (no HBM writes, no DMA).
    dst_col = dst[:, None]                                            # [E,1]
    dst_row = dst[None, :]                                            # [1,E]
    src_row = src[None, :]                                            # [1,E]
    batch_row = batch.astype(i32)[None, :]                            # [1,N]

    # Weights passed in [in, out] layout so the kernel does plain x @ W.
    kernel_args = (
        xe, x, dst_col, dst_row, src_row, batch_row,
        params["wi"].T.astype(f32), params["bi"].astype(f32),
        params["wh1"].T.astype(f32), params["bh1"].astype(f32),
        params["wh2"].T.astype(f32), params["bh2"].astype(f32),
        params["wf"].T[:Fin, :].astype(f32), params["wf"].T[Fin:, :].astype(f32),
        params["bf"].astype(f32),
        params["gamma"].astype(f32), params["beta"].astype(f32),
        params["wo"].T.astype(f32),
    )

    # Advisory cost estimate — dominant terms are the E*N*H structural matmuls.
    flops = (2 * E * (Fin + Fe) * H
             + steps * (4 * E * N * H + 4 * E * H * H)
             + 2 * N * E * H + 2 * N * (Fin + H) * H
             + 2 * G * N * H + 2 * G * H * out_size)
    bytes_accessed = sum(int(a.size) * a.dtype.itemsize for a in kernel_args)
    bytes_accessed += G * out_size * 4

    n_in = len(kernel_args)
    return pl.pallas_call(
        functools.partial(dmpnn_kernel, steps, mxu_dtype),
        out_shape=jax.ShapeDtypeStruct((G, out_size), f32),
        in_specs=[pl.BlockSpec(memory_space=pltpu.MemorySpace.VMEM)] * n_in,
        out_specs=pl.BlockSpec(memory_space=pltpu.MemorySpace.VMEM),
        compiler_params=pltpu.CompilerParams(
            vmem_limit_bytes=_vmem_limit_bytes()),
        cost_estimate=pl.CostEstimate(flops=flops,
                                      transcendentals=N,
                                      bytes_accessed=bytes_accessed),
    )(*kernel_args)


def hqfx_dmpnn_reference(x, edge_attr, edge_index, batch, num_graphs, params, steps):
    """Pure-JAX mirror of the PyTorch forward (type=1, inference)."""
    src, dst = edge_index[0], edge_index[1]
    N = x.shape[0]
    h0 = jnp.concatenate([x[src], edge_attr], axis=1)
    h0 = jax.nn.relu(h0 @ params["wi"].T + params["bi"])
    h = h0
    for _ in range(steps):
        h_ = jax.ops.segment_sum(h, dst, num_segments=N)
        m = h_[dst] - h
        t = jax.nn.relu(m @ params["wh1"].T + params["bh1"])
        t = t @ params["wh2"].T + params["bh2"]
        h = jax.nn.relu(h0 + t)
    m = jax.ops.segment_sum(h, src, num_segments=N)
    hf = jax.nn.relu(jnp.concatenate([x, m], axis=1) @ params["wf"].T + params["bf"])
    mean = hf.mean(-1, keepdims=True)
    var = ((hf - mean) ** 2).mean(-1, keepdims=True)
    hn = (hf - mean) / jnp.sqrt(var + 1e-5) * params["gamma"] + params["beta"]
    hn = jax.nn.relu(hn)
    counts = jax.ops.segment_sum(jnp.ones((N,), jnp.float32), batch,
                                 num_segments=num_graphs)
    pooled = jax.ops.segment_sum(hn, batch, num_segments=num_graphs) / counts[:, None]
    return pooled @ params["wo"].T


if __name__ == "__main__":
    # Module hyper-parameters (type=1, n_qubits=None -> single bias-free readout).
    input_size, hidden_size, output_size, edge_size = 8, 32, 4, 6
    steps = 3
    N, E, G = 12, 20, 2  # nodes, directed edges, graphs in the batch

    key = jax.random.PRNGKey(0)
    ks = jax.random.split(key, 16)
    f32 = jnp.float32

    # Graph data.
    x = jax.random.normal(ks[0], (N, input_size), f32)
    edge_attr = jax.random.normal(ks[1], (E, edge_size), f32)
    src = jax.random.randint(ks[2], (E,), 0, N)
    dst = jax.random.randint(ks[3], (E,), 0, N)
    edge_index = jnp.stack([src, dst], axis=0)
    batch = jnp.concatenate([jnp.zeros((N // 2,), jnp.int32),
                             jnp.ones((N - N // 2,), jnp.int32)])

    # Deterministic parameter init (PyTorch weight layout: [out, in]).
    def w(k, o, i):
        return 0.1 * jax.random.normal(k, (o, i), f32)

    params = dict(
        wi=w(ks[4], hidden_size, input_size + edge_size),
        bi=0.1 * jax.random.normal(ks[5], (1, hidden_size), f32),
        wh1=w(ks[6], hidden_size, hidden_size),
        bh1=0.1 * jax.random.normal(ks[7], (1, hidden_size), f32),
        wh2=w(ks[8], hidden_size, hidden_size),
        bh2=0.1 * jax.random.normal(ks[9], (1, hidden_size), f32),
        wf=w(ks[10], hidden_size, input_size + hidden_size),
        bf=0.1 * jax.random.normal(ks[11], (1, hidden_size), f32),
        gamma=1.0 + 0.05 * jax.random.normal(ks[12], (1, hidden_size), f32),
        beta=0.05 * jax.random.normal(ks[13], (1, hidden_size), f32),
        wo=w(ks[14], output_size, hidden_size),  # final_dense, bias=False
    )

    ref = hqfx_dmpnn_reference(x, edge_attr, edge_index, batch, G, params, steps)

    # Exact-semantics path (f32 MXU operands): tight check vs. the reference.
    out_f32 = hqfx_dmpnn_pallas(x, edge_attr, edge_index, batch, G, params,
                                steps, mxu_bf16=False)
    out_f32 = jax.block_until_ready(out_f32)
    assert out_f32.shape == (G, output_size)
    assert jnp.allclose(out_f32, ref, rtol=1e-4, atol=1e-4), (out_f32, ref)

    # bf16-at-MXU-inputs fast path (f32 accumulation): loose tolerance only
    # accounts for bf16 operand rounding of weights/activations; the 0/1
    # structural operands are exact in bf16 and the pooled readout stays f32.
    out_bf16 = hqfx_dmpnn_pallas(x, edge_attr, edge_index, batch, G, params,
                                 steps, mxu_bf16=True)
    out_bf16 = jax.block_until_ready(out_bf16)
    assert out_bf16.shape == (G, output_size)
    assert jnp.all(jnp.isfinite(out_bf16))
    assert jnp.allclose(out_bf16, ref, rtol=1e-1, atol=1e-1), (out_bf16, ref)

    # Larger step count exercises the lax.fori_loop message-passing path.
    steps_long = 6
    ref_long = hqfx_dmpnn_reference(x, edge_attr, edge_index, batch, G, params,
                                    steps_long)
    out_long = hqfx_dmpnn_pallas(x, edge_attr, edge_index, batch, G, params,
                                 steps_long, mxu_bf16=False)
    out_long = jax.block_until_ready(out_long)
    assert out_long.shape == (G, output_size)
    assert jnp.allclose(out_long, ref_long, rtol=1e-3, atol=1e-3), (out_long, ref_long)

    print("KERNEL_OK")
</pallas_src>

<mosaic_0001>
module attributes {stable_mosaic.version = 11 : i64} {
  func.func @dmpnn_kernel(%arg0: memref<20x14xf32, #tpu.memory_space<vmem>>, %arg1: memref<12x8xf32, #tpu.memory_space<vmem>>, %arg2: memref<20x1xi32, #tpu.memory_space<vmem>>, %arg3: memref<1x20xi32, #tpu.memory_space<vmem>>, %arg4: memref<1x20xi32, #tpu.memory_space<vmem>>, %arg5: memref<1x12xi32, #tpu.memory_space<vmem>>, %arg6: memref<14x32xf32, #tpu.memory_space<vmem>>, %arg7: memref<1x32xf32, #tpu.memory_space<vmem>>, %arg8: memref<32x32xf32, #tpu.memory_space<vmem>>, %arg9: memref<1x32xf32, #tpu.memory_space<vmem>>, %arg10: memref<32x32xf32, #tpu.memory_space<vmem>>, %arg11: memref<1x32xf32, #tpu.memory_space<vmem>>, %arg12: memref<8x32xf32, #tpu.memory_space<vmem>>, %arg13: memref<32x32xf32, #tpu.memory_space<vmem>>, %arg14: memref<1x32xf32, #tpu.memory_space<vmem>>, %arg15: memref<1x32xf32, #tpu.memory_space<vmem>>, %arg16: memref<1x32xf32, #tpu.memory_space<vmem>>, %arg17: memref<32x4xf32, #tpu.memory_space<vmem>>, %arg18: memref<2x4xf32, #tpu.memory_space<vmem>>) attributes {dimension_semantics = [], scalar_prefetch = 0 : i64, scratch_operands = 0 : i64, tpu.core_type = #tpu.core_type<tc>} {
    %0 = tpu.iota {dimensions = array<i32: 1>} : vector<20x12xi32>
    %1 = tpu.iota {dimensions = array<i32: 0>} : vector<12x20xi32>
    %c0 = arith.constant 0 : index
    %c0_0 = arith.constant 0 : index
    %2 = vector.load %arg2[%c0, %c0_0] : memref<20x1xi32, #tpu.memory_space<vmem>>, vector<20x1xi32>
    %3 = vector.broadcast %2 : vector<20x1xi32> to vector<20x12xi32>
    %4 = arith.cmpi eq, %3, %0 : vector<20x12xi32>
    %5 = arith.extui %4 : vector<20x12xi1> to vector<20x12xi32>
    %6 = arith.sitofp %5 : vector<20x12xi32> to vector<20x12xf32>
    %c0_1 = arith.constant 0 : index
    %c0_2 = arith.constant 0 : index
    %7 = vector.load %arg3[%c0_1, %c0_2] : memref<1x20xi32, #tpu.memory_space<vmem>>, vector<1x20xi32>
    %8 = vector.broadcast %7 : vector<1x20xi32> to vector<12x20xi32>
    %9 = arith.cmpi eq, %1, %8 : vector<12x20xi32>
    %10 = arith.extui %9 : vector<12x20xi1> to vector<12x20xi32>
    %11 = arith.sitofp %10 : vector<12x20xi32> to vector<12x20xf32>
    %c0_3 = arith.constant 0 : index
    %c0_4 = arith.constant 0 : index
    %12 = vector.load %arg4[%c0_3, %c0_4] : memref<1x20xi32, #tpu.memory_space<vmem>>, vector<1x20xi32>
    %13 = vector.broadcast %12 : vector<1x20xi32> to vector<12x20xi32>
    %14 = arith.cmpi eq, %1, %13 : vector<12x20xi32>
    %15 = arith.extui %14 : vector<12x20xi1> to vector<12x20xi32>
    %16 = arith.sitofp %15 : vector<12x20xi32> to vector<12x20xf32>
    %c0_5 = arith.constant 0 : index
    %c0_6 = arith.constant 0 : index
    %17 = vector.load %arg8[%c0_5, %c0_6] : memref<32x32xf32, #tpu.memory_space<vmem>>, vector<32x32xf32>
    %c0_7 = arith.constant 0 : index
    %c0_8 = arith.constant 0 : index
    %18 = vector.load %arg10[%c0_7, %c0_8] : memref<32x32xf32, #tpu.memory_space<vmem>>, vector<32x32xf32>
    %c0_9 = arith.constant 0 : index
    %c0_10 = arith.constant 0 : index
    %19 = vector.load %arg9[%c0_9, %c0_10] : memref<1x32xf32, #tpu.memory_space<vmem>>, vector<1x32xf32>
    %c0_11 = arith.constant 0 : index
    %c0_12 = arith.constant 0 : index
    %20 = vector.load %arg11[%c0_11, %c0_12] : memref<1x32xf32, #tpu.memory_space<vmem>>, vector<1x32xf32>
    %c0_13 = arith.constant 0 : index
    %c0_14 = arith.constant 0 : index
    %21 = vector.load %arg0[%c0_13, %c0_14] : memref<20x14xf32, #tpu.memory_space<vmem>>, vector<20x14xf32>
    %c0_15 = arith.constant 0 : index
    %c0_16 = arith.constant 0 : index
    %22 = vector.load %arg6[%c0_15, %c0_16] : memref<14x32xf32, #tpu.memory_space<vmem>>, vector<14x32xf32>
    %cst = arith.constant dense<0.000000e+00> : vector<20x32xf32>
    %23 = tpu.matmul %21, %22, %cst {dimension_numbers = #tpu.dot_dimension_numbers<[1], [0], [0], [1], [0, 0, 1, 1], [], []>} : vector<20x14xf32>, vector<14x32xf32>, vector<20x32xf32> -> vector<20x32xf32>
    %c0_17 = arith.constant 0 : index
    %c0_18 = arith.constant 0 : index
    %24 = vector.load %arg7[%c0_17, %c0_18] : memref<1x32xf32, #tpu.memory_space<vmem>>, vector<1x32xf32>
    %25 = vector.broadcast %24 : vector<1x32xf32> to vector<20x32xf32>
    %26 = arith.addf %23, %25 : vector<20x32xf32>
    %cst_19 = arith.constant 0.000000e+00 : f32
    %27 = vector.broadcast %cst_19 : f32 to vector<20x32xf32>
    %28 = arith.maximumf %26, %27 : vector<20x32xf32>
    %cst_20 = arith.constant dense<0.000000e+00> : vector<12x32xf32>
    %29 = tpu.matmul %11, %28, %cst_20 {dimension_numbers = #tpu.dot_dimension_numbers<[1], [0], [0], [1], [0, 0, 1, 1], [], []>} : vector<12x20xf32>, vector<20x32xf32>, vector<12x32xf32> -> vector<12x32xf32>
    %cst_21 = arith.constant dense<0.000000e+00> : vector<20x32xf32>
    %30 = tpu.matmul %6, %29, %cst_21 {dimension_numbers = #tpu.dot_dimension_numbers<[1], [0], [0], [1], [0, 0, 1, 1], [], []>} : vector<20x12xf32>, vector<12x32xf32>, vector<20x32xf32> -> vector<20x32xf32>
    %31 = arith.subf %30, %28 : vector<20x32xf32>
    %cst_22 = arith.constant dense<0.000000e+00> : vector<20x32xf32>
    %32 = tpu.matmul %31, %17, %cst_22 {dimension_numbers = #tpu.dot_dimension_numbers<[1], [0], [0], [1], [0, 0, 1, 1], [], []>} : vector<20x32xf32>, vector<32x32xf32>, vector<20x32xf32> -> vector<20x32xf32>
    %33 = vector.broadcast %19 : vector<1x32xf32> to vector<20x32xf32>
    %34 = arith.addf %32, %33 : vector<20x32xf32>
    %cst_23 = arith.constant 0.000000e+00 : f32
    %35 = vector.broadcast %cst_23 : f32 to vector<20x32xf32>
    %36 = arith.maximumf %34, %35 : vector<20x32xf32>
    %cst_24 = arith.constant dense<0.000000e+00> : vector<20x32xf32>
    %37 = tpu.matmul %36, %18, %cst_24 {dimension_numbers = #tpu.dot_dimension_numbers<[1], [0], [0], [1], [0, 0, 1, 1], [], []>} : vector<20x32xf32>, vector<32x32xf32>, vector<20x32xf32> -> vector<20x32xf32>
    %38 = vector.broadcast %20 : vector<1x32xf32> to vector<20x32xf32>
    %39 = arith.addf %37, %38 : vector<20x32xf32>
    %40 = arith.addf %28, %39 : vector<20x32xf32>
    %cst_25 = arith.constant 0.000000e+00 : f32
    %41 = vector.broadcast %cst_25 : f32 to vector<20x32xf32>
    %42 = arith.maximumf %40, %41 : vector<20x32xf32>
    %cst_26 = arith.constant dense<0.000000e+00> : vector<12x32xf32>
    %43 = tpu.matmul %11, %42, %cst_26 {dimension_numbers = #tpu.dot_dimension_numbers<[1], [0], [0], [1], [0, 0, 1, 1], [], []>} : vector<12x20xf32>, vector<20x32xf32>, vector<12x32xf32> -> vector<12x32xf32>
    %cst_27 = arith.constant dense<0.000000e+00> : vector<20x32xf32>
    %44 = tpu.matmul %6, %43, %cst_27 {dimension_numbers = #tpu.dot_dimension_numbers<[1], [0], [0], [1], [0, 0, 1, 1], [], []>} : vector<20x12xf32>, vector<12x32xf32>, vector<20x32xf32> -> vector<20x32xf32>
    %45 = arith.subf %44, %42 : vector<20x32xf32>
    %cst_28 = arith.constant dense<0.000000e+00> : vector<20x32xf32>
    %46 = tpu.matmul %45, %17, %cst_28 {dimension_numbers = #tpu.dot_dimension_numbers<[1], [0], [0], [1], [0, 0, 1, 1], [], []>} : vector<20x32xf32>, vector<32x32xf32>, vector<20x32xf32> -> vector<20x32xf32>
    %47 = vector.broadcast %19 : vector<1x32xf32> to vector<20x32xf32>
    %48 = arith.addf %46, %47 : vector<20x32xf32>
    %cst_29 = arith.constant 0.000000e+00 : f32
    %49 = vector.broadcast %cst_29 : f32 to vector<20x32xf32>
    %50 = arith.maximumf %48, %49 : vector<20x32xf32>
    %cst_30 = arith.constant dense<0.000000e+00> : vector<20x32xf32>
    %51 = tpu.matmul %50, %18, %cst_30 {dimension_numbers = #tpu.dot_dimension_numbers<[1], [0], [0], [1], [0, 0, 1, 1], [], []>} : vector<20x32xf32>, vector<32x32xf32>, vector<20x32xf32> -> vector<20x32xf32>
    %52 = vector.broadcast %20 : vector<1x32xf32> to vector<20x32xf32>
    %53 = arith.addf %51, %52 : vector<20x32xf32>
    %54 = arith.addf %28, %53 : vector<20x32xf32>
    %cst_31 = arith.constant 0.000000e+00 : f32
    %55 = vector.broadcast %cst_31 : f32 to vector<20x32xf32>
    %56 = arith.maximumf %54, %55 : vector<20x32xf32>
    %cst_32 = arith.constant dense<0.000000e+00> : vector<12x32xf32>
    %57 = tpu.matmul %11, %56, %cst_32 {dimension_numbers = #tpu.dot_dimension_numbers<[1], [0], [0], [1], [0, 0, 1, 1], [], []>} : vector<12x20xf32>, vector<20x32xf32>, vector<12x32xf32> -> vector<12x32xf32>
    %cst_33 = arith.constant dense<0.000000e+00> : vector<20x32xf32>
    %58 = tpu.matmul %6, %57, %cst_33 {dimension_numbers = #tpu.dot_dimension_numbers<[1], [0], [0], [1], [0, 0, 1, 1], [], []>} : vector<20x12xf32>, vector<12x32xf32>, vector<20x32xf32> -> vector<20x32xf32>
    %59 = arith.subf %58, %56 : vector<20x32xf32>
    %cst_34 = arith.constant dense<0.000000e+00> : vector<20x32xf32>
    %60 = tpu.matmul %59, %17, %cst_34 {dimension_numbers = #tpu.dot_dimension_numbers<[1], [0], [0], [1], [0, 0, 1, 1], [], []>} : vector<20x32xf32>, vector<32x32xf32>, vector<20x32xf32> -> vector<20x32xf32>
    %61 = vector.broadcast %19 : vector<1x32xf32> to vector<20x32xf32>
    %62 = arith.addf %60, %61 : vector<20x32xf32>
    %cst_35 = arith.constant 0.000000e+00 : f32
    %63 = vector.broadcast %cst_35 : f32 to vector<20x32xf32>
    %64 = arith.maximumf %62, %63 : vector<20x32xf32>
    %cst_36 = arith.constant dense<0.000000e+00> : vector<20x32xf32>
    %65 = tpu.matmul %64, %18, %cst_36 {dimension_numbers = #tpu.dot_dimension_numbers<[1], [0], [0], [1], [0, 0, 1, 1], [], []>} : vector<20x32xf32>, vector<32x32xf32>, vector<20x32xf32> -> vector<20x32xf32>
    %66 = vector.broadcast %20 : vector<1x32xf32> to vector<20x32xf32>
    %67 = arith.addf %65, %66 : vector<20x32xf32>
    %68 = arith.addf %28, %67 : vector<20x32xf32>
    %cst_37 = arith.constant 0.000000e+00 : f32
    %69 = vector.broadcast %cst_37 : f32 to vector<20x32xf32>
    %70 = arith.maximumf %68, %69 : vector<20x32xf32>
    %cst_38 = arith.constant dense<0.000000e+00> : vector<12x32xf32>
    %71 = tpu.matmul %16, %70, %cst_38 {dimension_numbers = #tpu.dot_dimension_numbers<[1], [0], [0], [1], [0, 0, 1, 1], [], []>} : vector<12x20xf32>, vector<20x32xf32>, vector<12x32xf32> -> vector<12x32xf32>
    %c0_39 = arith.constant 0 : index
    %c0_40 = arith.constant 0 : index
    %72 = vector.load %arg1[%c0_39, %c0_40] : memref<12x8xf32, #tpu.memory_space<vmem>>, vector<12x8xf32>
    %c0_41 = arith.constant 0 : index
    %c0_42 = arith.constant 0 : index
    %73 = vector.load %arg12[%c0_41, %c0_42] : memref<8x32xf32, #tpu.memory_space<vmem>>, vector<8x32xf32>
    %cst_43 = arith.constant dense<0.000000e+00> : vector<12x32xf32>
    %74 = tpu.matmul %72, %73, %cst_43 {dimension_numbers = #tpu.dot_dimension_numbers<[1], [0], [0], [1], [0, 0, 1, 1], [], []>} : vector<12x8xf32>, vector<8x32xf32>, vector<12x32xf32> -> vector<12x32xf32>
    %c0_44 = arith.constant 0 : index
    %c0_45 = arith.constant 0 : index
    %75 = vector.load %arg13[%c0_44, %c0_45] : memref<32x32xf32, #tpu.memory_space<vmem>>, vector<32x32xf32>
    %cst_46 = arith.constant dense<0.000000e+00> : vector<12x32xf32>
    %76 = tpu.matmul %71, %75, %cst_46 {dimension_numbers = #tpu.dot_dimension_numbers<[1], [0], [0], [1], [0, 0, 1, 1], [], []>} : vector<12x32xf32>, vector<32x32xf32>, vector<12x32xf32> -> vector<12x32xf32>
    %77 = arith.addf %74, %76 : vector<12x32xf32>
    %c0_47 = arith.constant 0 : index
    %c0_48 = arith.constant 0 : index
    %78 = vector.load %arg14[%c0_47, %c0_48] : memref<1x32xf32, #tpu.memory_space<vmem>>, vector<1x32xf32>
    %79 = vector.broadcast %78 : vector<1x32xf32> to vector<12x32xf32>
    %80 = arith.addf %77, %79 : vector<12x32xf32>
    %cst_49 = arith.constant 0.000000e+00 : f32
    %81 = vector.broadcast %cst_49 : f32 to vector<12x32xf32>
    %82 = arith.maximumf %80, %81 : vector<12x32xf32>
    %cst_50 = arith.constant dense<0.000000e+00> : vector<12xf32>
    %83 = vector.multi_reduction <add>, %82, %cst_50 [1] : vector<12x32xf32> to vector<12xf32>
    %84 = vector.shape_cast %83 : vector<12xf32> to vector<12x1xf32>
    %cst_51 = arith.constant 3.200000e+01 : f32
    %85 = vector.broadcast %cst_51 : f32 to vector<12x1xf32>
    %86 = arith.divf %84, %85 : vector<12x1xf32>
    %87 = vector.broadcast %86 : vector<12x1xf32> to vector<12x32xf32>
    %88 = arith.subf %82, %87 : vector<12x32xf32>
    %89 = arith.mulf %88, %88 : vector<12x32xf32>
    %cst_52 = arith.constant dense<0.000000e+00> : vector<12xf32>
    %90 = vector.multi_reduction <add>, %89, %cst_52 [1] : vector<12x32xf32> to vector<12xf32>
    %91 = vector.shape_cast %90 : vector<12xf32> to vector<12x1xf32>
    %cst_53 = arith.constant 3.200000e+01 : f32
    %92 = vector.broadcast %cst_53 : f32 to vector<12x1xf32>
    %93 = arith.divf %91, %92 : vector<12x1xf32>
    %cst_54 = arith.constant 9.99999974E-6 : f32
    %94 = vector.broadcast %cst_54 : f32 to vector<12x1xf32>
    %95 = arith.addf %93, %94 : vector<12x1xf32>
    %96 = math.rsqrt %95 : vector<12x1xf32>
    %97 = vector.broadcast %96 : vector<12x1xf32> to vector<12x32xf32>
    %98 = arith.mulf %88, %97 : vector<12x32xf32>
    %c0_55 = arith.constant 0 : index
    %c0_56 = arith.constant 0 : index
    %99 = vector.load %arg15[%c0_55, %c0_56] : memref<1x32xf32, #tpu.memory_space<vmem>>, vector<1x32xf32>
    %100 = vector.broadcast %99 : vector<1x32xf32> to vector<12x32xf32>
    %101 = arith.mulf %98, %100 : vector<12x32xf32>
    %c0_57 = arith.constant 0 : index
    %c0_58 = arith.constant 0 : index
    %102 = vector.load %arg16[%c0_57, %c0_58] : memref<1x32xf32, #tpu.memory_space<vmem>>, vector<1x32xf32>
    %103 = vector.broadcast %102 : vector<1x32xf32> to vector<12x32xf32>
    %104 = arith.addf %101, %103 : vector<12x32xf32>
    %cst_59 = arith.constant 0.000000e+00 : f32
    %105 = vector.broadcast %cst_59 : f32 to vector<12x32xf32>
    %106 = arith.maximumf %104, %105 : vector<12x32xf32>
    %107 = tpu.iota {dimensions = array<i32: 0>} : vector<2x12xi32>
    %c0_60 = arith.constant 0 : index
    %c0_61 = arith.constant 0 : index
    %108 = vector.load %arg5[%c0_60, %c0_61] : memref<1x12xi32, #tpu.memory_space<vmem>>, vector<1x12xi32>
    %109 = vector.broadcast %108 : vector<1x12xi32> to vector<2x12xi32>
    %110 = arith.cmpi eq, %107, %109 : vector<2x12xi32>
    %111 = arith.extui %110 : vector<2x12xi1> to vector<2x12xi32>
    %112 = arith.sitofp %111 : vector<2x12xi32> to vector<2x12xf32>
    %cst_62 = arith.constant dense<0.000000e+00> : vector<2xf32>
    %113 = vector.multi_reduction <add>, %112, %cst_62 [1] : vector<2x12xf32> to vector<2xf32>
    %114 = vector.shape_cast %113 : vector<2xf32> to vector<2x1xf32>
    %cst_63 = arith.constant 1.000000e+00 : f32
    %115 = vector.broadcast %cst_63 : f32 to vector<2x1xf32>
    %116 = arith.maximumf %114, %115 : vector<2x1xf32>
    %cst_64 = arith.constant dense<0.000000e+00> : vector<2x32xf32>
    %117 = tpu.matmul %112, %106, %cst_64 {dimension_numbers = #tpu.dot_dimension_numbers<[1], [0], [0], [1], [0, 0, 1, 1], [], []>} : vector<2x12xf32>, vector<12x32xf32>, vector<2x32xf32> -> vector<2x32xf32>
    %118 = vector.broadcast %116 : vector<2x1xf32> to vector<2x32xf32>
    %119 = arith.divf %117, %118 : vector<2x32xf32>
    %c0_65 = arith.constant 0 : index
    %c0_66 = arith.constant 0 : index
    %120 = vector.load %arg17[%c0_65, %c0_66] : memref<32x4xf32, #tpu.memory_space<vmem>>, vector<32x4xf32>
    %cst_67 = arith.constant dense<0.000000e+00> : vector<2x4xf32>
    %121 = tpu.matmul %119, %120, %cst_67 {dimension_numbers = #tpu.dot_dimension_numbers<[1], [0], [0], [1], [0, 0, 1, 1], [], []>} : vector<2x32xf32>, vector<32x4xf32>, vector<2x4xf32> -> vector<2x4xf32>
    %c0_68 = arith.constant 0 : index
    %c0_69 = arith.constant 0 : index
    %122 = vector.load %arg18[%c0_68, %c0_69] : memref<2x4xf32, #tpu.memory_space<vmem>>, vector<2x4xf32>
    tpu.vector_store %arg18[%c0_68, %c0_69], %121 {strides = array<i32>} : memref<2x4xf32, #tpu.memory_space<vmem>>, vector<2x4xf32>,
    return
  }
}

</mosaic_0001>

<llo_original>
// kernel: tpu_custom_call.1
$region0: #{tpu_custom_call.1}
  #allocation0 [shape = 'u32[]', space=smem, size = 0x4, offset = 0x4, fixed_abs, tag = 'smem constant byte address 0x4 - core index']
  #allocation1 [shape = 'u32[144,128]{1,0:T(1,128)}', space=vmem, size = 0x12000, scoped, tag = 'internal scratch']
  %s0 = inlined_call_operand.vmem [shape: f32[20,14], index: 0, kind: input, shape index: {}]
  %s1 = inlined_call_operand.vmem [shape: f32[12,8], index: 1, kind: input, shape index: {}]
  %s2 = inlined_call_operand.vmem [shape: s32[20,1], index: 2, kind: input, shape index: {}]
  %s3 = inlined_call_operand.vmem [shape: s32[1,20], index: 3, kind: input, shape index: {}]
  %s4 = inlined_call_operand.vmem [shape: s32[1,20], index: 4, kind: input, shape index: {}]
  %s5 = inlined_call_operand.vmem [shape: s32[1,12], index: 5, kind: input, shape index: {}]
  %s6 = inlined_call_operand.vmem [shape: f32[14,32], index: 6, kind: input, shape index: {}]
  %s7 = inlined_call_operand.vmem [shape: f32[1,32], index: 7, kind: input, shape index: {}]
  %s8 = inlined_call_operand.vmem [shape: f32[32,32], index: 8, kind: input, shape index: {}]
  %s9 = inlined_call_operand.vmem [shape: f32[1,32], index: 9, kind: input, shape index: {}]
  %s10 = inlined_call_operand.vmem [shape: f32[32,32], index: 10, kind: input, shape index: {}]
  %s11 = inlined_call_operand.vmem [shape: f32[1,32], index: 11, kind: input, shape index: {}]
  %s12 = inlined_call_operand.vmem [shape: f32[8,32], index: 12, kind: input, shape index: {}]
  %s13 = inlined_call_operand.vmem [shape: f32[32,32], index: 13, kind: input, shape index: {}]
  %s14 = inlined_call_operand.vmem [shape: f32[1,32], index: 14, kind: input, shape index: {}]
  %s15 = inlined_call_operand.vmem [shape: f32[1,32], index: 15, kind: input, shape index: {}]
  %s16 = inlined_call_operand.vmem [shape: f32[1,32], index: 16, kind: input, shape index: {}]
  %s17 = inlined_call_operand.vmem [shape: f32[32,4], index: 17, kind: input, shape index: {}]
  %s18 = inlined_call_operand.hbm [shape: f32[2,4], index: 18, kind: output, shape index: {}]
  %s19 = sld [smem:[#allocation0]]
  $region82: #{tpu_custom_call.1} parent=0
    _
  %s21 = ssub.s32 1, %s19
  %s22 = scalar_select 0, %s21, %s19
  $region1: #{tpu_custom_call.1} parent=0
    #allocation2 [shape = 'u8[1024]{0}', space=vmem, size = 0x400, scoped, tag = 'output window, operand 0, single buffered']
    #allocation3 [shape = 's32[1]{0}', space=sflag, size = 0x4, scoped, tag = 'scoped memory for tpu_custom_call.1']
    %23 = vsyncpa [#allocation3], 0
    // Predicated region
    $region2: #{tpu_custom_call.1} parent=1 // pred_check
      _
    $region3: #{tpu_custom_call.1} parent=1 // pred_check_branch
      %25 = sbr.rel (0) target = $region5
    $region4: #{tpu_custom_call.1} parent=1 // pred_region
      _
    $region5: #{tpu_custom_call.1} parent=1 // pred_fallthru
      _
    // Predicated region
    $region6: #{tpu_custom_call.1} parent=1 // pred_check
      _
    $region7: #{tpu_custom_call.1} parent=1 // pred_check_branch
      %27 = sbr.rel (0) target = $region9
    $region8: #{tpu_custom_call.1} parent=1 // pred_region
      _
    $region9: #{tpu_custom_call.1} parent=1 // pred_fallthru
      _
    // Predicated region
    $region10: #{tpu_custom_call.1} parent=1 // pred_check
      _
    $region11: #{tpu_custom_call.1} parent=1 // pred_check_branch
      %29 = sbr.rel (0) target = $region13
    $region12: #{tpu_custom_call.1} parent=1 // pred_region
      _
    $region13: #{tpu_custom_call.1} parent=1 // pred_fallthru
      _
    // Predicated region
    $region14: #{tpu_custom_call.1} parent=1 // pred_check
      _
    $region15: #{tpu_custom_call.1} parent=1 // pred_check_branch
      %31 = sbr.rel (0) target = $region17
    $region16: #{tpu_custom_call.1} parent=1 // pred_region
      _
    $region17: #{tpu_custom_call.1} parent=1 // pred_fallthru
      _
    // Predicated region
    $region18: #{tpu_custom_call.1} parent=1 // pred_check
      _
    $region19: #{tpu_custom_call.1} parent=1 // pred_check_branch
      %33 = sbr.rel (0) target = $region21
    $region20: #{tpu_custom_call.1} parent=1 // pred_region
      _
    $region21: #{tpu_custom_call.1} parent=1 // pred_fallthru
      _
    // Predicated region
    $region22: #{tpu_custom_call.1} parent=1 // pred_check
      _
    $region23: #{tpu_custom_call.1} parent=1 // pred_check_branch
      %35 = sbr.rel (0) target = $region25
    $region24: #{tpu_custom_call.1} parent=1 // pred_region
      _
    $region25: #{tpu_custom_call.1} parent=1 // pred_fallthru
      _
    // Predicated region
    $region26: #{tpu_custom_call.1} parent=1 // pred_check
      _
    $region27: #{tpu_custom_call.1} parent=1 // pred_check_branch
      %37 = sbr.rel (0) target = $region29
    $region28: #{tpu_custom_call.1} parent=1 // pred_region
      _
    $region29: #{tpu_custom_call.1} parent=1 // pred_fallthru
      _
    // Predicated region
    $region30: #{tpu_custom_call.1} parent=1 // pred_check
      _
    $region31: #{tpu_custom_call.1} parent=1 // pred_check_branch
      %39 = sbr.rel (0) target = $region33
    $region32: #{tpu_custom_call.1} parent=1 // pred_region
      _
    $region33: #{tpu_custom_call.1} parent=1 // pred_fallthru
      _
    // Predicated region
    $region34: #{tpu_custom_call.1} parent=1 // pred_check
      _
    $region35: #{tpu_custom_call.1} parent=1 // pred_check_branch
      %41 = sbr.rel (0) target = $region37
    $region36: #{tpu_custom_call.1} parent=1 // pred_region
      _
    $region37: #{tpu_custom_call.1} parent=1 // pred_fallthru
      _
    // Predicated region
    $region38: #{tpu_custom_call.1} parent=1 // pred_check
      _
    $region39: #{tpu_custom_call.1} parent=1 // pred_check_branch
      %43 = sbr.rel (0) target = $region41
    $region40: #{tpu_custom_call.1} parent=1 // pred_region
      _
    $region41: #{tpu_custom_call.1} parent=1 // pred_fallthru
      _
    // Predicated region
    $region42: #{tpu_custom_call.1} parent=1 // pred_check
      _
    $region43: #{tpu_custom_call.1} parent=1 // pred_check_branch
      %45 = sbr.rel (0) target = $region45
    $region44: #{tpu_custom_call.1} parent=1 // pred_region
      _
    $region45: #{tpu_custom_call.1} parent=1 // pred_fallthru
      _
    // Predicated region
    $region46: #{tpu_custom_call.1} parent=1 // pred_check
      _
    $region47: #{tpu_custom_call.1} parent=1 // pred_check_branch
      %47 = sbr.rel (0) target = $region49
    $region48: #{tpu_custom_call.1} parent=1 // pred_region
      _
    $region49: #{tpu_custom_call.1} parent=1 // pred_fallthru
      _
    // Predicated region
    $region50: #{tpu_custom_call.1} parent=1 // pred_check
      _
    $region51: #{tpu_custom_call.1} parent=1 // pred_check_branch
      %49 = sbr.rel (0) target = $region53
    $region52: #{tpu_custom_call.1} parent=1 // pred_region
      _
    $region53: #{tpu_custom_call.1} parent=1 // pred_fallthru
      _
    // Predicated region
    $region54: #{tpu_custom_call.1} parent=1 // pred_check
      _
    $region55: #{tpu_custom_call.1} parent=1 // pred_check_branch
      %51 = sbr.rel (0) target = $region57
    $region56: #{tpu_custom_call.1} parent=1 // pred_region
      _
    $region57: #{tpu_custom_call.1} parent=1 // pred_fallthru
      _
    // Predicated region
    $region58: #{tpu_custom_call.1} parent=1 // pred_check
      _
    $region59: #{tpu_custom_call.1} parent=1 // pred_check_branch
      %53 = sbr.rel (0) target = $region61
    $region60: #{tpu_custom_call.1} parent=1 // pred_region
      _
    $region61: #{tpu_custom_call.1} parent=1 // pred_fallthru
      _
    // Predicated region
    $region62: #{tpu_custom_call.1} parent=1 // pred_check
      _
    $region63: #{tpu_custom_call.1} parent=1 // pred_check_branch
      %55 = sbr.rel (0) target = $region65
    $region64: #{tpu_custom_call.1} parent=1 // pred_region
      _
    $region65: #{tpu_custom_call.1} parent=1 // pred_fallthru
      _
    // Predicated region
    $region66: #{tpu_custom_call.1} parent=1 // pred_check
      _
    $region67: #{tpu_custom_call.1} parent=1 // pred_check_branch
      %57 = sbr.rel (0) target = $region69
    $region68: #{tpu_custom_call.1} parent=1 // pred_region
      _
    $region69: #{tpu_custom_call.1} parent=1 // pred_fallthru
      _
    // Predicated region
    $region70: #{tpu_custom_call.1} parent=1 // pred_check
      _
    $region71: #{tpu_custom_call.1} parent=1 // pred_check_branch
      %59 = sbr.rel (0) target = $region73
    $region72: #{tpu_custom_call.1} parent=1 // pred_region
      _
    $region73: #{tpu_custom_call.1} parent=1 // pred_fallthru
      _
    %v60 = vlaneseq
    %v61 = vand.u32 %v60, 127
    %v62 = vlaneseq
    %v63 = vshrl.u32 %v62, 7
    %v64 = vadd.s32 %v63, 8
    %v65 = vld [vmem:[%s2] sm:$0xff]
    %v66 = vld [vmem:[%s2 + $0x8] sm:$0xff]
    %v67 = vld [vmem:[%s2 + $0x10] sm:$0xf]
    %68 = vset.pattern.permute.xlu0 0
    %69 = vperm.xlu0 %68, %v65
    %v70 = vpop.permute.xlu0 %69
    %71 = vset.pattern.permute.xlu0 0
    %72 = vperm.xlu0 %71, %v66
    %v73 = vpop.permute.xlu0 %72
    %74 = vset.pattern.permute.xlu0 0
    %75 = vperm.xlu0 %74, %v67
    %v76 = vpop.permute.xlu0 %75
    %vm77 = vcmp.eq.s32.totalorder %v70, %v61
    %vm78 = vcmp.eq.s32.totalorder %v73, %v61
    %vm79 = vcmp.eq.s32.totalorder %v76, %v61
    %v80 = vsel %vm77, 1, 0
    %v81 = vsel %vm78, 1, 0
    %v82 = vsel %vm79, 1, 0
    %v83 = vcvt.s32.f32 %v80
    %v84 = vcvt.s32.f32 %v81
    %v85 = vcvt.s32.f32 %v82
    %v86 = vld [vmem:[%s3] sm:$0x1]
    %v87 = vlaneseq
    %v88 = vshrl.u32 %v87, 7
    %v89 = vsub.s32 0, %v88
    %v90 = vrot.slane %v86, %v89
    %vm91 = vcmp.eq.s32.totalorder %v63, %v90
    %vm92 = vcmp.eq.s32.totalorder %v64, %v90
    %v93 = vsel %vm91, 1, 0
    %v94 = vsel %vm92, 1, 0
    %v95 = vcvt.s32.f32 %v93
    %v96 = vcvt.s32.f32 %v94
    %v97 = vld [vmem:[%s4] sm:$0x1]
    %v98 = vlaneseq
    %v99 = vshrl.u32 %v98, 7
    %v100 = vsub.s32 0, %v99
    %v101 = vrot.slane %v97, %v100
    %vm102 = vcmp.eq.s32.totalorder %v63, %v101
    %vm103 = vcmp.eq.s32.totalorder %v64, %v101
    %v104 = vsel %vm102, 1, 0
    %v105 = vsel %vm103, 1, 0
    %v106 = vcvt.s32.f32 %v104
    %v107 = vcvt.s32.f32 %v105
    %v108 = vld [vmem:[%s8] sm:$0xff]
    %v109 = vld [vmem:[%s8 + $0x8] sm:$0xff]
    %v110 = vld [vmem:[%s8 + $0x10] sm:$0xff]
    %v111 = vld [vmem:[%s8 + $0x18] sm:$0xff]
    %v112 = vld [vmem:[%s10] sm:$0xff]
    %v113 = vld [vmem:[%s10 + $0x8] sm:$0xff]
    %v114 = vld [vmem:[%s10 + $0x10] sm:$0xff]
    %v115 = vld [vmem:[%s10 + $0x18] sm:$0xff]
    %v116 = vld [vmem:[%s9] sm:$0x1]
    %v117 = vld [vmem:[%s11] sm:$0x1]
    %v118 = vld [vmem:[%s0] sm:$0xff]
    %v119 = vld [vmem:[%s0 + $0x8] sm:$0xff]
    %v120 = vld [vmem:[%s0 + $0x10] sm:$0xf]
    %v121 = vld [vmem:[%s6] sm:$0xff]
    %v122 = vld [vmem:[%s6 + $0x8] sm:$0x3f]
    %v123 = vld [vmem:[%s7] sm:$0x1]
    %v125 = vlaneseq
    %v126 = vshrl.u32 %v125, 7
    %v127 = vsub.s32 0, %v126
    %v128 = vrot.slane %v123, %v127
    %vm130 = vcmask 113664
    %v132 = vsel %vm130, %v118, 0
    %v135 = vsel %vm130, %v119, 0
    %v138 = vsel %vm130, %v120, 0
    %vm140 = vcmask 1045504
    %v142 = vsel %vm140, %v122, 0
    %144 = vmatprep.subr.mxu0 0.0
    %145 = vmatpush1.msra.mxu0 0.0
    %146 = vmatprep.subr.mxu0 0.0
    %147 = vmatpush1.msra.mxu0 0.0
    %148 = vmatprep.subr.mxu0 0.0
    %149 = vmatpush1.msra.mxu0 0.0
    %150 = vmatprep.subr.mxu0 0.0
    %151 = vmatpush1.msra.mxu0 0.0
    %152 = vmatprep.subr.mxu0 0.0
    %153 = vmatpush1.msra.mxu0 0.0
    %154 = vmatprep.subr.mxu0 0.0
    %155 = vmatpush1.msra.mxu0 0.0
    %156 = vmatprep.subr.mxu0 0.0
    %157 = vmatpush1.msra.mxu0 0.0
    %158 = vmatprep.subr.mxu0 0.0
    %159 = vmatpush1.msra.mxu0 0.0
    %160 = vmatprep.subr.mxu0 0.0
    %161 = vmatpush1.msra.mxu0 0.0
    %162 = vmatprep.subr.mxu0 0.0
    %163 = vmatpush1.msra.mxu0 0.0
    %164 = vmatprep.subr.mxu0 0.0
    %165 = vmatpush1.msra.mxu0 0.0
    %166 = vmatprep.subr.mxu0 0.0
    %167 = vmatpush1.msra.mxu0 0.0
    %168 = vmatprep.subr.mxu0 0.0
    %169 = vmatpush1.msra.mxu0 0.0
    %170 = vmatprep.subr.mxu0 0.0
    %171 = vmatpush1.msra.mxu0 0.0
    %172 = vmatprep.subr.mxu0 0.0
    %173 = vmatpush1.msra.mxu0 %v142
    %174 = vmatprep.subr.mxu0 0.0
    %175 = vmatpush1.msra.mxu0 %v121
    %176 = vmatprep.subr.mxu0 0.0
    %177 = vmatpush2.msra.mxu0 0.0
    %178 = vmatprep.subr.mxu0 0.0
    %179 = vmatpush2.msra.mxu0 0.0
    %180 = vmatprep.subr.mxu0 0.0
    %181 = vmatpush2.msra.mxu0 0.0
    %182 = vmatprep.subr.mxu0 0.0
    %183 = vmatpush2.msra.mxu0 0.0
    %184 = vmatprep.subr.mxu0 0.0
    %185 = vmatpush2.msra.mxu0 0.0
    %186 = vmatprep.subr.mxu0 0.0
    %187 = vmatpush2.msra.mxu0 0.0
    %188 = vmatprep.subr.mxu0 0.0
    %189 = vmatpush2.msra.mxu0 0.0
    %190 = vmatprep.subr.mxu0 0.0
    %191 = vmatpush2.msra.mxu0 0.0
    %192 = vmatprep.subr.mxu0 0.0
    %193 = vmatpush2.msra.mxu0 0.0
    %194 = vmatprep.subr.mxu0 0.0
    %195 = vmatpush2.msra.mxu0 0.0
    %196 = vmatprep.subr.mxu0 0.0
    %197 = vmatpush2.msra.mxu0 0.0
    %198 = vmatprep.subr.mxu0 0.0
    %199 = vmatpush2.msra.mxu0 0.0
    %200 = vmatprep.subr.mxu0 0.0
    %201 = vmatpush2.msra.mxu0 0.0
    %202 = vmatprep.subr.mxu0 0.0
    %203 = vmatpush2.msra.mxu0 0.0
    %204 = vmatprep.subr.mxu0 0.0
    %205 = vmatpush2.msra.mxu0 0.0
    %206 = vmatprep.subr.mxu0 0.0
    %207 = vmatpush2.msra.mxu0 0.0
    %208 = vmatprep.mubr.f32.mxu0 0.0
    %209 = vmatmul.mubr.f32.gmra.mxu0 %v132
    %v210 = vpop.f32.mrf.mxu0
    %v211 = vadd.f32 %v128, %v210
    %v212 = vpop.f32.mrf.mxu0
    %213 = vmatprep.mubr.f32.mxu0 0.0
    %214 = vmatmul.mubr.f32.gmra.mxu0 %v135
    %v215 = vpop.f32.mrf.mxu0
    %v216 = vadd.f32 %v128, %v215
    %v217 = vpop.f32.mrf.mxu0
    %218 = vmatprep.mubr.f32.mxu0 0.0
    %219 = vmatmul.mubr.f32.gmra.mxu0 %v138
    %v220 = vpop.f32.mrf.mxu0
    %v221 = vadd.f32 %v128, %v220
    %v222 = vpop.f32.mrf.mxu0
    %223 = vdwg.mxu0
    %v224 = vmax.f32 %v211, 0.0
    %v225 = vmax.f32 %v216, 0.0
    %v226 = vmax.f32 %v221, 0.0
    %vm227 = vcmask 162816
    %v229 = vsel %vm227, %v95, 0
    %v232 = vsel %vm227, %v96, 0
    %vm234 = vcmask 1043456
    %v236 = vsel %vm234, %v226, 0
    %238 = vmatprep.subr.mxu0 0.0
    %239 = vmatpush1.msra.mxu0 0.0
    %240 = vmatprep.subr.mxu0 0.0
    %241 = vmatpush1.msra.mxu0 0.0
    %242 = vmatprep.subr.mxu0 0.0
    %243 = vmatpush1.msra.mxu0 0.0
    %244 = vmatprep.subr.mxu0 0.0
    %245 = vmatpush1.msra.mxu0 0.0
    %246 = vmatprep.subr.mxu0 0.0
    %247 = vmatpush1.msra.mxu0 0.0
    %248 = vmatprep.subr.mxu0 0.0
    %249 = vmatpush1.msra.mxu0 0.0
    %250 = vmatprep.subr.mxu0 0.0
    %251 = vmatpush1.msra.mxu0 0.0
    %252 = vmatprep.subr.mxu0 0.0
    %253 = vmatpush1.msra.mxu0 0.0
    %254 = vmatprep.subr.mxu0 0.0
    %255 = vmatpush1.msra.mxu0 0.0
    %256 = vmatprep.subr.mxu0 0.0
    %257 = vmatpush1.msra.mxu0 0.0
    %258 = vmatprep.subr.mxu0 0.0
    %259 = vmatpush1.msra.mxu0 0.0
    %260 = vmatprep.subr.mxu0 0.0
    %261 = vmatpush1.msra.mxu0 0.0
    %262 = vmatprep.subr.mxu0 0.0
    %263 = vmatpush1.msra.mxu0 0.0
    %264 = vmatprep.subr.mxu0 0.0
    %265 = vmatpush1.msra.mxu0 %v236
    %266 = vmatprep.subr.mxu0 0.0
    %267 = vmatpush1.msra.mxu0 %v225
    %268 = vmatprep.subr.mxu0 0.0
    %269 = vmatpush1.msra.mxu0 %v224
    %270 = vmatprep.subr.mxu0 0.0
    %271 = vmatpush2.msra.mxu0 0.0
    %272 = vmatprep.subr.mxu0 0.0
    %273 = vmatpush2.msra.mxu0 0.0
    %274 = vmatprep.subr.mxu0 0.0
    %275 = vmatpush2.msra.mxu0 0.0
    %276 = vmatprep.subr.mxu0 0.0
    %277 = vmatpush2.msra.mxu0 0.0
    %278 = vmatprep.subr.mxu0 0.0
    %279 = vmatpush2.msra.mxu0 0.0
    %280 = vmatprep.subr.mxu0 0.0
    %281 = vmatpush2.msra.mxu0 0.0
    %282 = vmatprep.subr.mxu0 0.0
    %283 = vmatpush2.msra.mxu0 0.0
    %284 = vmatprep.subr.mxu0 0.0
    %285 = vmatpush2.msra.mxu0 0.0
    %286 = vmatprep.subr.mxu0 0.0
    %287 = vmatpush2.msra.mxu0 0.0
    %288 = vmatprep.subr.mxu0 0.0
    %289 = vmatpush2.msra.mxu0 0.0
    %290 = vmatprep.subr.mxu0 0.0
    %291 = vmatpush2.msra.mxu0 0.0
    %292 = vmatprep.subr.mxu0 0.0
    %293 = vmatpush2.msra.mxu0 0.0
    %294 = vmatprep.subr.mxu0 0.0
    %295 = vmatpush2.msra.mxu0 0.0
    %296 = vmatprep.subr.mxu0 0.0
    %297 = vmatpush2.msra.mxu0 0.0
    %298 = vmatprep.subr.mxu0 0.0
    %299 = vmatpush2.msra.mxu0 0.0
    %300 = vmatprep.subr.mxu0 0.0
    %301 = vmatpush2.msra.mxu0 0.0
    %302 = vmatprep.mubr.f32.mxu0 0.0
    %303 = vmatmul.mubr.f32.gmra.mxu0 %v229
    %v304 = vpop.f32.mrf.mxu0
    %v305 = vadd.f32 0.0, %v304
    %v306 = vpop.f32.mrf.mxu0
    %307 = vmatprep.mubr.f32.mxu0 0.0
    %308 = vmatmul.mubr.f32.gmra.mxu0 %v232
    %v309 = vpop.f32.mrf.mxu0
    %v310 = vadd.f32 0.0, %v309
    %v311 = vpop.f32.mrf.mxu0
    %312 = vdwg.mxu0
    %vm313 = vcmask 97280
    %v315 = vsel %vm313, %v83, 0
    %v318 = vsel %vm313, %v84, 0
    %v321 = vsel %vm313, %v85, 0
    %v324 = vsel %vm234, %v310, 0
    %326 = vmatprep.subr.mxu0 0.0
    %327 = vmatpush1.msra.mxu0 0.0
    %328 = vmatprep.subr.mxu0 0.0
    %329 = vmatpush1.msra.mxu0 0.0
    %330 = vmatprep.subr.mxu0 0.0
    %331 = vmatpush1.msra.mxu0 0.0
    %332 = vmatprep.subr.mxu0 0.0
    %333 = vmatpush1.msra.mxu0 0.0
    %334 = vmatprep.subr.mxu0 0.0
    %335 = vmatpush1.msra.mxu0 0.0
    %336 = vmatprep.subr.mxu0 0.0
    %337 = vmatpush1.msra.mxu0 0.0
    %338 = vmatprep.subr.mxu0 0.0
    %339 = vmatpush1.msra.mxu0 0.0
    %340 = vmatprep.subr.mxu0 0.0
    %341 = vmatpush1.msra.mxu0 0.0
    %342 = vmatprep.subr.mxu0 0.0
    %343 = vmatpush1.msra.mxu0 0.0
    %344 = vmatprep.subr.mxu0 0.0
    %345 = vmatpush1.msra.mxu0 0.0
    %346 = vmatprep.subr.mxu0 0.0
    %347 = vmatpush1.msra.mxu0 0.0
    %348 = vmatprep.subr.mxu0 0.0
    %349 = vmatpush1.msra.mxu0 0.0
    %350 = vmatprep.subr.mxu0 0.0
    %351 = vmatpush1.msra.mxu0 0.0
    %352 = vmatprep.subr.mxu0 0.0
    %353 = vmatpush1.msra.mxu0 0.0
    %354 = vmatprep.subr.mxu0 0.0
    %355 = vmatpush1.msra.mxu0 %v324
    %356 = vmatprep.subr.mxu0 0.0
    %357 = vmatpush1.msra.mxu0 %v305
    %358 = vmatprep.subr.mxu0 0.0
    %359 = vmatpush2.msra.mxu0 0.0
    %360 = vmatprep.subr.mxu0 0.0
    %361 = vmatpush2.msra.mxu0 0.0
    %362 = vmatprep.subr.mxu0 0.0
    %363 = vmatpush2.msra.mxu0 0.0
    %364 = vmatprep.subr.mxu0 0.0
    %365 = vmatpush2.msra.mxu0 0.0
    %366 = vmatprep.subr.mxu0 0.0
    %367 = vmatpush2.msra.mxu0 0.0
    %368 = vmatprep.subr.mxu0 0.0
    %369 = vmatpush2.msra.mxu0 0.0
    %370 = vmatprep.subr.mxu0 0.0
    %371 = vmatpush2.msra.mxu0 0.0
    %372 = vmatprep.subr.mxu0 0.0
    %373 = vmatpush2.msra.mxu0 0.0
    %374 = vmatprep.subr.mxu0 0.0
    %375 = vmatpush2.msra.mxu0 0.0
    %376 = vmatprep.subr.mxu0 0.0
    %377 = vmatpush2.msra.mxu0 0.0
    %378 = vmatprep.subr.mxu0 0.0
    %379 = vmatpush2.msra.mxu0 0.0
    %380 = vmatprep.subr.mxu0 0.0
    %381 = vmatpush2.msra.mxu0 0.0
    %382 = vmatprep.subr.mxu0 0.0
    %383 = vmatpush2.msra.mxu0 0.0
    %384 = vmatprep.subr.mxu0 0.0
    %385 = vmatpush2.msra.mxu0 0.0
    %386 = vmatprep.subr.mxu0 0.0
    %387 = vmatpush2.msra.mxu0 0.0
    %388 = vmatprep.subr.mxu0 0.0
    %389 = vmatpush2.msra.mxu0 0.0
    %390 = vmatprep.mubr.f32.mxu0 0.0
    %391 = vmatmul.mubr.f32.gmra.mxu0 %v315
    %v392 = vpop.f32.mrf.mxu0
    %v393 = vadd.f32 0.0, %v392
    %v394 = vpop.f32.mrf.mxu0
    %395 = vmatprep.mubr.f32.mxu0 0.0
    %396 = vmatmul.mubr.f32.gmra.mxu0 %v318
    %v397 = vpop.f32.mrf.mxu0
    %v398 = vadd.f32 0.0, %v397
    %v399 = vpop.f32.mrf.mxu0
    %400 = vmatprep.mubr.f32.mxu0 0.0
    %401 = vmatmul.mubr.f32.gmra.mxu0 %v321
    %v402 = vpop.f32.mrf.mxu0
    %v403 = vadd.f32 0.0, %v402
    %v404 = vpop.f32.mrf.mxu0
    %405 = vdwg.mxu0
    %v406 = vsub.f32 %v393, %v224
    %v407 = vsub.f32 %v398, %v225
    %v408 = vsub.f32 %v403, %v226
    %v410 = vlaneseq
    %v411 = vshrl.u32 %v410, 7
    %v412 = vsub.s32 0, %v411
    %v413 = vrot.slane %v116, %v412
    %vm415 = vcmask 261120
    %v417 = vsel %vm415, %v406, 0
    %v420 = vsel %vm415, %v407, 0
    %v423 = vsel %vm415, %v408, 0
    %425 = vmatprep.subr.mxu0 0.0
    %426 = vmatpush1.msra.mxu0 0.0
    %427 = vmatprep.subr.mxu0 0.0
    %428 = vmatpush1.msra.mxu0 0.0
    %429 = vmatprep.subr.mxu0 0.0
    %430 = vmatpush1.msra.mxu0 0.0
    %431 = vmatprep.subr.mxu0 0.0
    %432 = vmatpush1.msra.mxu0 0.0
    %433 = vmatprep.subr.mxu0 0.0
    %434 = vmatpush1.msra.mxu0 0.0
    %435 = vmatprep.subr.mxu0 0.0
    %436 = vmatpush1.msra.mxu0 0.0
    %437 = vmatprep.subr.mxu0 0.0
    %438 = vmatpush1.msra.mxu0 0.0
    %439 = vmatprep.subr.mxu0 0.0
    %440 = vmatpush1.msra.mxu0 0.0
    %441 = vmatprep.subr.mxu0 0.0
    %442 = vmatpush1.msra.mxu0 0.0
    %443 = vmatprep.subr.mxu0 0.0
    %444 = vmatpush1.msra.mxu0 0.0
    %445 = vmatprep.subr.mxu0 0.0
    %446 = vmatpush1.msra.mxu0 0.0
    %447 = vmatprep.subr.mxu0 0.0
    %448 = vmatpush1.msra.mxu0 0.0
    %449 = vmatprep.subr.mxu0 0.0
    %450 = vmatpush1.msra.mxu0 %v111
    %451 = vmatprep.subr.mxu0 0.0
    %452 = vmatpush1.msra.mxu0 %v110
    %453 = vmatprep.subr.mxu0 0.0
    %454 = vmatpush1.msra.mxu0 %v109
    %455 = vmatprep.subr.mxu0 0.0
    %456 = vmatpush1.msra.mxu0 %v108
    %457 = vmatprep.subr.mxu0 0.0
    %458 = vmatpush2.msra.mxu0 0.0
    %459 = vmatprep.subr.mxu0 0.0
    %460 = vmatpush2.msra.mxu0 0.0
    %461 = vmatprep.subr.mxu0 0.0
    %462 = vmatpush2.msra.mxu0 0.0
    %463 = vmatprep.subr.mxu0 0.0
    %464 = vmatpush2.msra.mxu0 0.0
    %465 = vmatprep.subr.mxu0 0.0
    %466 = vmatpush2.msra.mxu0 0.0
    %467 = vmatprep.subr.mxu0 0.0
    %468 = vmatpush2.msra.mxu0 0.0
    %469 = vmatprep.subr.mxu0 0.0
    %470 = vmatpush2.msra.mxu0 0.0
    %471 = vmatprep.subr.mxu0 0.0
    %472 = vmatpush2.msra.mxu0 0.0
    %473 = vmatprep.subr.mxu0 0.0
    %474 = vmatpush2.msra.mxu0 0.0
    %475 = vmatprep.subr.mxu0 0.0
    %476 = vmatpush2.msra.mxu0 0.0
    %477 = vmatprep.subr.mxu0 0.0
    %478 = vmatpush2.msra.mxu0 0.0
    %479 = vmatprep.subr.mxu0 0.0
    %480 = vmatpush2.msra.mxu0 0.0
    %481 = vmatprep.subr.mxu0 0.0
    %482 = vmatpush2.msra.mxu0 0.0
    %483 = vmatprep.subr.mxu0 0.0
    %484 = vmatpush2.msra.mxu0 0.0
    %485 = vmatprep.subr.mxu0 0.0
    %486 = vmatpush2.msra.mxu0 0.0
    %487 = vmatprep.subr.mxu0 0.0
    %488 = vmatpush2.msra.mxu0 0.0
    %489 = vmatprep.mubr.f32.mxu0 0.0
    %490 = vmatmul.mubr.f32.gmra.mxu0 %v417
    %v491 = vpop.f32.mrf.mxu0
    %v492 = vadd.f32 %v413, %v491
    %v493 = vpop.f32.mrf.mxu0
    %494 = vmatprep.mubr.f32.mxu0 0.0
    %495 = vmatmul.mubr.f32.gmra.mxu0 %v420
    %v496 = vpop.f32.mrf.mxu0
    %v497 = vadd.f32 %v413, %v496
    %v498 = vpop.f32.mrf.mxu0
    %499 = vmatprep.mubr.f32.mxu0 0.0
    %500 = vmatmul.mubr.f32.gmra.mxu0 %v423
    %v501 = vpop.f32.mrf.mxu0
    %v502 = vadd.f32 %v413, %v501
    %v503 = vpop.f32.mrf.mxu0
    %504 = vdwg.mxu0
    %v505 = vmax.f32 %v492, 0.0
    %v506 = vmax.f32 %v497, 0.0
    %v507 = vmax.f32 %v502, 0.0
    %v509 = vlaneseq
    %v510 = vshrl.u32 %v509, 7
    %v511 = vsub.s32 0, %v510
    %v512 = vrot.slane %v117, %v511
    %v515 = vsel %vm415, %v505, 0
    %v518 = vsel %vm415, %v506, 0
    %v521 = vsel %vm415, %v507, 0
    %523 = vmatprep.subr.mxu0 0.0
    %524 = vmatpush1.msra.mxu0 0.0
    %525 = vmatprep.subr.mxu0 0.0
    %526 = vmatpush1.msra.mxu0 0.0
    %527 = vmatprep.subr.mxu0 0.0
    %528 = vmatpush1.msra.mxu0 0.0
    %529 = vmatprep.subr.mxu0 0.0
    %530 = vmatpush1.msra.mxu0 0.0
    %531 = vmatprep.subr.mxu0 0.0
    %532 = vmatpush1.msra.mxu0 0.0
    %533 = vmatprep.subr.mxu0 0.0
    %534 = vmatpush1.msra.mxu0 0.0
    %535 = vmatprep.subr.mxu0 0.0
    %536 = vmatpush1.msra.mxu0 0.0
    %537 = vmatprep.subr.mxu0 0.0
    %538 = vmatpush1.msra.mxu0 0.0
    %539 = vmatprep.subr.mxu0 0.0
    %540 = vmatpush1.msra.mxu0 0.0
    %541 = vmatprep.subr.mxu0 0.0
    %542 = vmatpush1.msra.mxu0 0.0
    %543 = vmatprep.subr.mxu0 0.0
    %544 = vmatpush1.msra.mxu0 0.0
    %545 = vmatprep.subr.mxu0 0.0
    %546 = vmatpush1.msra.mxu0 0.0
    %547 = vmatprep.subr.mxu0 0.0
    %548 = vmatpush1.msra.mxu0 %v115
    %549 = vmatprep.subr.mxu0 0.0
    %550 = vmatpush1.msra.mxu0 %v114
    %551 = vmatprep.subr.mxu0 0.0
    %552 = vmatpush1.msra.mxu0 %v113
    %553 = vmatprep.subr.mxu0 0.0
    %554 = vmatpush1.msra.mxu0 %v112
    %555 = vmatprep.subr.mxu0 0.0
    %556 = vmatpush2.msra.mxu0 0.0
    %557 = vmatprep.subr.mxu0 0.0
    %558 = vmatpush2.msra.mxu0 0.0
    %559 = vmatprep.subr.mxu0 0.0
    %560 = vmatpush2.msra.mxu0 0.0
    %561 = vmatprep.subr.mxu0 0.0
    %562 = vmatpush2.msra.mxu0 0.0
    %563 = vmatprep.subr.mxu0 0.0
    %564 = vmatpush2.msra.mxu0 0.0
    %565 = vmatprep.subr.mxu0 0.0
    %566 = vmatpush2.msra.mxu0 0.0
    %567 = vmatprep.subr.mxu0 0.0
    %568 = vmatpush2.msra.mxu0 0.0
    %569 = vmatprep.subr.mxu0 0.0
    %570 = vmatpush2.msra.mxu0 0.0
    %571 = vmatprep.subr.mxu0 0.0
    %572 = vmatpush2.msra.mxu0 0.0
    %573 = vmatprep.subr.mxu0 0.0
    %574 = vmatpush2.msra.mxu0 0.0
    %575 = vmatprep.subr.mxu0 0.0
    %576 = vmatpush2.msra.mxu0 0.0
    %577 = vmatprep.subr.mxu0 0.0
    %578 = vmatpush2.msra.mxu0 0.0
    %579 = vmatprep.subr.mxu0 0.0
    %580 = vmatpush2.msra.mxu0 0.0
    %581 = vmatprep.subr.mxu0 0.0
    %582 = vmatpush2.msra.mxu0 0.0
    %583 = vmatprep.subr.mxu0 0.0
    %584 = vmatpush2.msra.mxu0 0.0
    %585 = vmatprep.subr.mxu0 0.0
    %586 = vmatpush2.msra.mxu0 0.0
    %587 = vmatprep.mubr.f32.mxu0 0.0
    %588 = vmatmul.mubr.f32.gmra.mxu0 %v515
    %v589 = vpop.f32.mrf.mxu0
    %v590 = vadd.f32 %v512, %v589
    %v591 = vpop.f32.mrf.mxu0
    %592 = vmatprep.mubr.f32.mxu0 0.0
    %593 = vmatmul.mubr.f32.gmra.mxu0 %v518
    %v594 = vpop.f32.mrf.mxu0
    %v595 = vadd.f32 %v512, %v594
    %v596 = vpop.f32.mrf.mxu0
    %597 = vmatprep.mubr.f32.mxu0 0.0
    %598 = vmatmul.mubr.f32.gmra.mxu0 %v521
    %v599 = vpop.f32.mrf.mxu0
    %v600 = vadd.f32 %v512, %v599
    %v601 = vpop.f32.mrf.mxu0
    %602 = vdwg.mxu0
    %v603 = vadd.f32 %v224, %v590
    %v604 = vadd.f32 %v225, %v595
    %v605 = vadd.f32 %v226, %v600
    %v606 = vmax.f32 %v603, 0.0
    %v607 = vmax.f32 %v604, 0.0
    %v608 = vmax.f32 %v605, 0.0
    %v610 = vsel %vm234, %v608, 0
    %612 = vmatprep.subr.mxu0 0.0
    %613 = vmatpush1.msra.mxu0 0.0
    %614 = vmatprep.subr.mxu0 0.0
    %615 = vmatpush1.msra.mxu0 0.0
    %616 = vmatprep.subr.mxu0 0.0
    %617 = vmatpush1.msra.mxu0 0.0
    %618 = vmatprep.subr.mxu0 0.0
    %619 = vmatpush1.msra.mxu0 0.0
    %620 = vmatprep.subr.mxu0 0.0
    %621 = vmatpush1.msra.mxu0 0.0
    %622 = vmatprep.subr.mxu0 0.0
    %623 = vmatpush1.msra.mxu0 0.0
    %624 = vmatprep.subr.mxu0 0.0
    %625 = vmatpush1.msra.mxu0 0.0
    %626 = vmatprep.subr.mxu0 0.0
    %627 = vmatpush1.msra.mxu0 0.0
    %628 = vmatprep.subr.mxu0 0.0
    %629 = vmatpush1.msra.mxu0 0.0
    %630 = vmatprep.subr.mxu0 0.0
    %631 = vmatpush1.msra.mxu0 0.0
    %632 = vmatprep.subr.mxu0 0.0
    %633 = vmatpush1.msra.mxu0 0.0
    %634 = vmatprep.subr.mxu0 0.0
    %635 = vmatpush1.msra.mxu0 0.0
    %636 = vmatprep.subr.mxu0 0.0
    %637 = vmatpush1.msra.mxu0 0.0
    %638 = vmatprep.subr.mxu0 0.0
    %639 = vmatpush1.msra.mxu0 %v610
    %640 = vmatprep.subr.mxu0 0.0
    %641 = vmatpush1.msra.mxu0 %v607
    %642 = vmatprep.subr.mxu0 0.0
    %643 = vmatpush1.msra.mxu0 %v606
    %644 = vmatprep.subr.mxu0 0.0
    %645 = vmatpush2.msra.mxu0 0.0
    %646 = vmatprep.subr.mxu0 0.0
    %647 = vmatpush2.msra.mxu0 0.0
    %648 = vmatprep.subr.mxu0 0.0
    %649 = vmatpush2.msra.mxu0 0.0
    %650 = vmatprep.subr.mxu0 0.0
    %651 = vmatpush2.msra.mxu0 0.0
    %652 = vmatprep.subr.mxu0 0.0
    %653 = vmatpush2.msra.mxu0 0.0
    %654 = vmatprep.subr.mxu0 0.0
    %655 = vmatpush2.msra.mxu0 0.0
    %656 = vmatprep.subr.mxu0 0.0
    %657 = vmatpush2.msra.mxu0 0.0
    %658 = vmatprep.subr.mxu0 0.0
    %659 = vmatpush2.msra.mxu0 0.0
    %660 = vmatprep.subr.mxu0 0.0
    %661 = vmatpush2.msra.mxu0 0.0
    %662 = vmatprep.subr.mxu0 0.0
    %663 = vmatpush2.msra.mxu0 0.0
    %664 = vmatprep.subr.mxu0 0.0
    %665 = vmatpush2.msra.mxu0 0.0
    %666 = vmatprep.subr.mxu0 0.0
    %667 = vmatpush2.msra.mxu0 0.0
    %668 = vmatprep.subr.mxu0 0.0
    %669 = vmatpush2.msra.mxu0 0.0
    %670 = vmatprep.subr.mxu0 0.0
    %671 = vmatpush2.msra.mxu0 0.0
    %672 = vmatprep.subr.mxu0 0.0
    %673 = vmatpush2.msra.mxu0 0.0
    %674 = vmatprep.subr.mxu0 0.0
    %675 = vmatpush2.msra.mxu0 0.0
    %676 = vmatprep.mubr.f32.mxu0 0.0
    %677 = vmatmul.mubr.f32.gmra.mxu0 %v229
    %v678 = vpop.f32.mrf.mxu0
    %v679 = vadd.f32 0.0, %v678
    %v680 = vpop.f32.mrf.mxu0
    %681 = vmatprep.mubr.f32.mxu0 0.0
    %682 = vmatmul.mubr.f32.gmra.mxu0 %v232
    %v683 = vpop.f32.mrf.mxu0
    %v684 = vadd.f32 0.0, %v683
    %v685 = vpop.f32.mrf.mxu0
    %686 = vdwg.mxu0
    %v688 = vsel %vm234, %v684, 0
    %690 = vmatprep.subr.mxu0 0.0
    %691 = vmatpush1.msra.mxu0 0.0
    %692 = vmatprep.subr.mxu0 0.0
    %693 = vmatpush1.msra.mxu0 0.0
    %694 = vmatprep.subr.mxu0 0.0
    %695 = vmatpush1.msra.mxu0 0.0
    %696 = vmatprep.subr.mxu0 0.0
    %697 = vmatpush1.msra.mxu0 0.0
    %698 = vmatprep.subr.mxu0 0.0
    %699 = vmatpush1.msra.mxu0 0.0
    %700 = vmatprep.subr.mxu0 0.0
    %701 = vmatpush1.msra.mxu0 0.0
    %702 = vmatprep.subr.mxu0 0.0
    %703 = vmatpush1.msra.mxu0 0.0
    %704 = vmatprep.subr.mxu0 0.0
    %705 = vmatpush1.msra.mxu0 0.0
    %706 = vmatprep.subr.mxu0 0.0
    %707 = vmatpush1.msra.mxu0 0.0
    %708 = vmatprep.subr.mxu0 0.0
    %709 = vmatpush1.msra.mxu0 0.0
    %710 = vmatprep.subr.mxu0 0.0
    %711 = vmatpush1.msra.mxu0 0.0
    %712 = vmatprep.subr.mxu0 0.0
    %713 = vmatpush1.msra.mxu0 0.0
    %714 = vmatprep.subr.mxu0 0.0
    %715 = vmatpush1.msra.mxu0 0.0
    %716 = vmatprep.subr.mxu0 0.0
    %717 = vmatpush1.msra.mxu0 0.0
    %718 = vmatprep.subr.mxu0 0.0
    %719 = vmatpush1.msra.mxu0 %v688
    %720 = vmatprep.subr.mxu0 0.0
    %721 = vmatpush1.msra.mxu0 %v679
    %722 = vmatprep.subr.mxu0 0.0
    %723 = vmatpush2.msra.mxu0 0.0
    %724 = vmatprep.subr.mxu0 0.0
    %725 = vmatpush2.msra.mxu0 0.0
    %726 = vmatprep.subr.mxu0 0.0
    %727 = vmatpush2.msra.mxu0 0.0
    %728 = vmatprep.subr.mxu0 0.0
    %729 = vmatpush2.msra.mxu0 0.0
    %730 = vmatprep.subr.mxu0 0.0
    %731 = vmatpush2.msra.mxu0 0.0
    %732 = vmatprep.subr.mxu0 0.0
    %733 = vmatpush2.msra.mxu0 0.0
    %734 = vmatprep.subr.mxu0 0.0
    %735 = vmatpush2.msra.mxu0 0.0
    %736 = vmatprep.subr.mxu0 0.0
    %737 = vmatpush2.msra.mxu0 0.0
    %738 = vmatprep.subr.mxu0 0.0
    %739 = vmatpush2.msra.mxu0 0.0
    %740 = vmatprep.subr.mxu0 0.0
    %741 = vmatpush2.msra.mxu0 0.0
    %742 = vmatprep.subr.mxu0 0.0
    %743 = vmatpush2.msra.mxu0 0.0
    %744 = vmatprep.subr.mxu0 0.0
    %745 = vmatpush2.msra.mxu0 0.0
    %746 = vmatprep.subr.mxu0 0.0
    %747 = vmatpush2.msra.mxu0 0.0
    %748 = vmatprep.subr.mxu0 0.0
    %749 = vmatpush2.msra.mxu0 0.0
    %750 = vmatprep.subr.mxu0 0.0
    %751 = vmatpush2.msra.mxu0 0.0
    %752 = vmatprep.subr.mxu0 0.0
    %753 = vmatpush2.msra.mxu0 0.0
    %754 = vmatprep.mubr.f32.mxu0 0.0
    %755 = vmatmul.mubr.f32.gmra.mxu0 %v315
    %v756 = vpop.f32.mrf.mxu0
    %v757 = vadd.f32 0.0, %v756
    %v758 = vpop.f32.mrf.mxu0
    %759 = vmatprep.mubr.f32.mxu0 0.0
    %760 = vmatmul.mubr.f32.gmra.mxu0 %v318
    %v761 = vpop.f32.mrf.mxu0
    %v762 = vadd.f32 0.0, %v761
    %v763 = vpop.f32.mrf.mxu0
    %764 = vmatprep.mubr.f32.mxu0 0.0
    %765 = vmatmul.mubr.f32.gmra.mxu0 %v321
    %v766 = vpop.f32.mrf.mxu0
    %v767 = vadd.f32 0.0, %v766
    %v768 = vpop.f32.mrf.mxu0
    %769 = vdwg.mxu0
    %v770 = vsub.f32 %v757, %v606
    %v771 = vsub.f32 %v762, %v607
    %v772 = vsub.f32 %v767, %v608
    %v774 = vsel %vm415, %v770, 0
    %v777 = vsel %vm415, %v771, 0
    %v780 = vsel %vm415, %v772, 0
    %782 = vmatprep.subr.mxu0 0.0
    %783 = vmatpush1.msra.mxu0 0.0
    %784 = vmatprep.subr.mxu0 0.0
    %785 = vmatpush1.msra.mxu0 0.0
    %786 = vmatprep.subr.mxu0 0.0
    %787 = vmatpush1.msra.mxu0 0.0
    %788 = vmatprep.subr.mxu0 0.0
    %789 = vmatpush1.msra.mxu0 0.0
    %790 = vmatprep.subr.mxu0 0.0
    %791 = vmatpush1.msra.mxu0 0.0
    %792 = vmatprep.subr.mxu0 0.0
    %793 = vmatpush1.msra.mxu0 0.0
    %794 = vmatprep.subr.mxu0 0.0
    %795 = vmatpush1.msra.mxu0 0.0
    %796 = vmatprep.subr.mxu0 0.0
    %797 = vmatpush1.msra.mxu0 0.0
    %798 = vmatprep.subr.mxu0 0.0
    %799 = vmatpush1.msra.mxu0 0.0
    %800 = vmatprep.subr.mxu0 0.0
    %801 = vmatpush1.msra.mxu0 0.0
    %802 = vmatprep.subr.mxu0 0.0
    %803 = vmatpush1.msra.mxu0 0.0
    %804 = vmatprep.subr.mxu0 0.0
    %805 = vmatpush1.msra.mxu0 0.0
    %806 = vmatprep.subr.mxu0 0.0
    %807 = vmatpush1.msra.mxu0 %v111
    %808 = vmatprep.subr.mxu0 0.0
    %809 = vmatpush1.msra.mxu0 %v110
    %810 = vmatprep.subr.mxu0 0.0
    %811 = vmatpush1.msra.mxu0 %v109
    %812 = vmatprep.subr.mxu0 0.0
    %813 = vmatpush1.msra.mxu0 %v108
    %814 = vmatprep.subr.mxu0 0.0
    %815 = vmatpush2.msra.mxu0 0.0
    %816 = vmatprep.subr.mxu0 0.0
    %817 = vmatpush2.msra.mxu0 0.0
    %818 = vmatprep.subr.mxu0 0.0
    %819 = vmatpush2.msra.mxu0 0.0
    %820 = vmatprep.subr.mxu0 0.0
    %821 = vmatpush2.msra.mxu0 0.0
    %822 = vmatprep.subr.mxu0 0.0
    %823 = vmatpush2.msra.mxu0 0.0
    %824 = vmatprep.subr.mxu0 0.0
    %825 = vmatpush2.msra.mxu0 0.0
    %826 = vmatprep.subr.mxu0 0.0
    %827 = vmatpush2.msra.mxu0 0.0
    %828 = vmatprep.subr.mxu0 0.0
    %829 = vmatpush2.msra.mxu0 0.0
    %830 = vmatprep.subr.mxu0 0.0
    %831 = vmatpush2.msra.mxu0 0.0
    %832 = vmatprep.subr.mxu0 0.0
    %833 = vmatpush2.msra.mxu0 0.0
    %834 = vmatprep.subr.mxu0 0.0
    %835 = vmatpush2.msra.mxu0 0.0
    %836 = vmatprep.subr.mxu0 0.0
    %837 = vmatpush2.msra.mxu0 0.0
    %838 = vmatprep.subr.mxu0 0.0
    %839 = vmatpush2.msra.mxu0 0.0
    %840 = vmatprep.subr.mxu0 0.0
    %841 = vmatpush2.msra.mxu0 0.0
    %842 = vmatprep.subr.mxu0 0.0
    %843 = vmatpush2.msra.mxu0 0.0
    %844 = vmatprep.subr.mxu0 0.0
    %845 = vmatpush2.msra.mxu0 0.0
    %846 = vmatprep.mubr.f32.mxu0 0.0
    %847 = vmatmul.mubr.f32.gmra.mxu0 %v774
    %v848 = vpop.f32.mrf.mxu0
    %v849 = vadd.f32 %v413, %v848
    %v850 = vpop.f32.mrf.mxu0
    %851 = vmatprep.mubr.f32.mxu0 0.0
    %852 = vmatmul.mubr.f32.gmra.mxu0 %v777
    %v853 = vpop.f32.mrf.mxu0
    %v854 = vadd.f32 %v413, %v853
    %v855 = vpop.f32.mrf.mxu0
    %856 = vmatprep.mubr.f32.mxu0 0.0
    %857 = vmatmul.mubr.f32.gmra.mxu0 %v780
    %v858 = vpop.f32.mrf.mxu0
    %v859 = vadd.f32 %v413, %v858
    %v860 = vpop.f32.mrf.mxu0
    %861 = vdwg.mxu0
    %v862 = vmax.f32 %v849, 0.0
    %v863 = vmax.f32 %v854, 0.0
    %v864 = vmax.f32 %v859, 0.0
    %v866 = vsel %vm415, %v862, 0
    %v869 = vsel %vm415, %v863, 0
    %v872 = vsel %vm415, %v864, 0
    %874 = vmatprep.subr.mxu0 0.0
    %875 = vmatpush1.msra.mxu0 0.0
    %876 = vmatprep.subr.mxu0 0.0
    %877 = vmatpush1.msra.mxu0 0.0
    %878 = vmatprep.subr.mxu0 0.0
    %879 = vmatpush1.msra.mxu0 0.0
    %880 = vmatprep.subr.mxu0 0.0
    %881 = vmatpush1.msra.mxu0 0.0
    %882 = vmatprep.subr.mxu0 0.0
    %883 = vmatpush1.msra.mxu0 0.0
    %884 = vmatprep.subr.mxu0 0.0
    %885 = vmatpush1.msra.mxu0 0.0
    %886 = vmatprep.subr.mxu0 0.0
    %887 = vmatpush1.msra.mxu0 0.0
    %888 = vmatprep.subr.mxu0 0.0
    %889 = vmatpush1.msra.mxu0 0.0
    %890 = vmatprep.subr.mxu0 0.0
    %891 = vmatpush1.msra.mxu0 0.0
    %892 = vmatprep.subr.mxu0 0.0
    %893 = vmatpush1.msra.mxu0 0.0
    %894 = vmatprep.subr.mxu0 0.0
    %895 = vmatpush1.msra.mxu0 0.0
    %896 = vmatprep.subr.mxu0 0.0
    %897 = vmatpush1.msra.mxu0 0.0
    %898 = vmatprep.subr.mxu0 0.0
    %899 = vmatpush1.msra.mxu0 %v115
    %900 = vmatprep.subr.mxu0 0.0
    %901 = vmatpush1.msra.mxu0 %v114
    %902 = vmatprep.subr.mxu0 0.0
    %903 = vmatpush1.msra.mxu0 %v113
    %904 = vmatprep.subr.mxu0 0.0
    %905 = vmatpush1.msra.mxu0 %v112
    %906 = vmatprep.subr.mxu0 0.0
    %907 = vmatpush2.msra.mxu0 0.0
    %908 = vmatprep.subr.mxu0 0.0
    %909 = vmatpush2.msra.mxu0 0.0
    %910 = vmatprep.subr.mxu0 0.0
    %911 = vmatpush2.msra.mxu0 0.0
    %912 = vmatprep.subr.mxu0 0.0
    %913 = vmatpush2.msra.mxu0 0.0
    %914 = vmatprep.subr.mxu0 0.0
    %915 = vmatpush2.msra.mxu0 0.0
    %916 = vmatprep.subr.mxu0 0.0
    %917 = vmatpush2.msra.mxu0 0.0
    %918 = vmatprep.subr.mxu0 0.0
    %919 = vmatpush2.msra.mxu0 0.0
    %920 = vmatprep.subr.mxu0 0.0
    %921 = vmatpush2.msra.mxu0 0.0
    %922 = vmatprep.subr.mxu0 0.0
    %923 = vmatpush2.msra.mxu0 0.0
    %924 = vmatprep.subr.mxu0 0.0
    %925 = vmatpush2.msra.mxu0 0.0
    %926 = vmatprep.subr.mxu0 0.0
    %927 = vmatpush2.msra.mxu0 0.0
    %928 = vmatprep.subr.mxu0 0.0
    %929 = vmatpush2.msra.mxu0 0.0
    %930 = vmatprep.subr.mxu0 0.0
    %931 = vmatpush2.msra.mxu0 0.0
    %932 = vmatprep.subr.mxu0 0.0
    %933 = vmatpush2.msra.mxu0 0.0
    %934 = vmatprep.subr.mxu0 0.0
    %935 = vmatpush2.msra.mxu0 0.0
    %936 = vmatprep.subr.mxu0 0.0
    %937 = vmatpush2.msra.mxu0 0.0
    %938 = vmatprep.mubr.f32.mxu0 0.0
    %939 = vmatmul.mubr.f32.gmra.mxu0 %v866
    %v940 = vpop.f32.mrf.mxu0
    %v941 = vadd.f32 %v512, %v940
    %v942 = vpop.f32.mrf.mxu0
    %943 = vmatprep.mubr.f32.mxu0 0.0
    %944 = vmatmul.mubr.f32.gmra.mxu0 %v869
    %v945 = vpop.f32.mrf.mxu0
    %v946 = vadd.f32 %v512, %v945
    %v947 = vpop.f32.mrf.mxu0
    %948 = vmatprep.mubr.f32.mxu0 0.0
    %949 = vmatmul.mubr.f32.gmra.mxu0 %v872
    %v950 = vpop.f32.mrf.mxu0
    %v951 = vadd.f32 %v512, %v950
    %v952 = vpop.f32.mrf.mxu0
    %953 = vdwg.mxu0
    %v954 = vadd.f32 %v224, %v941
    %v955 = vadd.f32 %v225, %v946
    %v956 = vadd.f32 %v226, %v951
    %v957 = vmax.f32 %v954, 0.0
    %v958 = vmax.f32 %v955, 0.0
    %v959 = vmax.f32 %v956, 0.0
    %v961 = vsel %vm234, %v959, 0
    %963 = vmatprep.subr.mxu0 0.0
    %964 = vmatpush1.msra.mxu0 0.0
    %965 = vmatprep.subr.mxu0 0.0
    %966 = vmatpush1.msra.mxu0 0.0
    %967 = vmatprep.subr.mxu0 0.0
    %968 = vmatpush1.msra.mxu0 0.0
    %969 = vmatprep.subr.mxu0 0.0
    %970 = vmatpush1.msra.mxu0 0.0
    %971 = vmatprep.subr.mxu0 0.0
    %972 = vmatpush1.msra.mxu0 0.0
    %973 = vmatprep.subr.mxu0 0.0
    %974 = vmatpush1.msra.mxu0 0.0
    %975 = vmatprep.subr.mxu0 0.0
    %976 = vmatpush1.msra.mxu0 0.0
    %977 = vmatprep.subr.mxu0 0.0
    %978 = vmatpush1.msra.mxu0 0.0
    %979 = vmatprep.subr.mxu0 0.0
    %980 = vmatpush1.msra.mxu0 0.0
    %981 = vmatprep.subr.mxu0 0.0
    %982 = vmatpush1.msra.mxu0 0.0
    %983 = vmatprep.subr.mxu0 0.0
    %984 = vmatpush1.msra.mxu0 0.0
    %985 = vmatprep.subr.mxu0 0.0
    %986 = vmatpush1.msra.mxu0 0.0
    %987 = vmatprep.subr.mxu0 0.0
    %988 = vmatpush1.msra.mxu0 0.0
    %989 = vmatprep.subr.mxu0 0.0
    %990 = vmatpush1.msra.mxu0 %v961
    %991 = vmatprep.subr.mxu0 0.0
    %992 = vmatpush1.msra.mxu0 %v958
    %993 = vmatprep.subr.mxu0 0.0
    %994 = vmatpush1.msra.mxu0 %v957
    %995 = vmatprep.subr.mxu0 0.0
    %996 = vmatpush2.msra.mxu0 0.0
    %997 = vmatprep.subr.mxu0 0.0
    %998 = vmatpush2.msra.mxu0 0.0
    %999 = vmatprep.subr.mxu0 0.0
    %1000 = vmatpush2.msra.mxu0 0.0
    %1001 = vmatprep.subr.mxu0 0.0
    %1002 = vmatpush2.msra.mxu0 0.0
    %1003 = vmatprep.subr.mxu0 0.0
    %1004 = vmatpush2.msra.mxu0 0.0
    %1005 = vmatprep.subr.mxu0 0.0
    %1006 = vmatpush2.msra.mxu0 0.0
    %1007 = vmatprep.subr.mxu0 0.0
    %1008 = vmatpush2.msra.mxu0 0.0
    %1009 = vmatprep.subr.mxu0 0.0
    %1010 = vmatpush2.msra.mxu0 0.0
    %1011 = vmatprep.subr.mxu0 0.0
    %1012 = vmatpush2.msra.mxu0 0.0
    %1013 = vmatprep.subr.mxu0 0.0
    %1014 = vmatpush2.msra.mxu0 0.0
    %1015 = vmatprep.subr.mxu0 0.0
    %1016 = vmatpush2.msra.mxu0 0.0
    %1017 = vmatprep.subr.mxu0 0.0
    %1018 = vmatpush2.msra.mxu0 0.0
    %1019 = vmatprep.subr.mxu0 0.0
    %1020 = vmatpush2.msra.mxu0 0.0
    %1021 = vmatprep.subr.mxu0 0.0
    %1022 = vmatpush2.msra.mxu0 0.0
    %1023 = vmatprep.subr.mxu0 0.0
    %1024 = vmatpush2.msra.mxu0 0.0
    %1025 = vmatprep.subr.mxu0 0.0
    %1026 = vmatpush2.msra.mxu0 0.0
    %1027 = vmatprep.mubr.f32.mxu0 0.0
    %1028 = vmatmul.mubr.f32.gmra.mxu0 %v229
    %v1029 = vpop.f32.mrf.mxu0
    %v1030 = vadd.f32 0.0, %v1029
    %v1031 = vpop.f32.mrf.mxu0
    %1032 = vmatprep.mubr.f32.mxu0 0.0
    %1033 = vmatmul.mubr.f32.gmra.mxu0 %v232
    %v1034 = vpop.f32.mrf.mxu0
    %v1035 = vadd.f32 0.0, %v1034
    %v1036 = vpop.f32.mrf.mxu0
    %1037 = vdwg.mxu0
    %v1039 = vsel %vm234, %v1035, 0
    %1041 = vmatprep.subr.mxu0 0.0
    %1042 = vmatpush1.msra.mxu0 0.0
    %1043 = vmatprep.subr.mxu0 0.0
    %1044 = vmatpush1.msra.mxu0 0.0
    %1045 = vmatprep.subr.mxu0 0.0
    %1046 = vmatpush1.msra.mxu0 0.0
    %1047 = vmatprep.subr.mxu0 0.0
    %1048 = vmatpush1.msra.mxu0 0.0
    %1049 = vmatprep.subr.mxu0 0.0
    %1050 = vmatpush1.msra.mxu0 0.0
    %1051 = vmatprep.subr.mxu0 0.0
    %1052 = vmatpush1.msra.mxu0 0.0
    %1053 = vmatprep.subr.mxu0 0.0
    %1054 = vmatpush1.msra.mxu0 0.0
    %1055 = vmatprep.subr.mxu0 0.0
    %1056 = vmatpush1.msra.mxu0 0.0
    %1057 = vmatprep.subr.mxu0 0.0
    %1058 = vmatpush1.msra.mxu0 0.0
    %1059 = vmatprep.subr.mxu0 0.0
    %1060 = vmatpush1.msra.mxu0 0.0
    %1061 = vmatprep.subr.mxu0 0.0
    %1062 = vmatpush1.msra.mxu0 0.0
    %1063 = vmatprep.subr.mxu0 0.0
    %1064 = vmatpush1.msra.mxu0 0.0
    %1065 = vmatprep.subr.mxu0 0.0
    %1066 = vmatpush1.msra.mxu0 0.0
    %1067 = vmatprep.subr.mxu0 0.0
    %1068 = vmatpush1.msra.mxu0 0.0
    %1069 = vmatprep.subr.mxu0 0.0
    %1070 = vmatpush1.msra.mxu0 %v1039
    %1071 = vmatprep.subr.mxu0 0.0
    %1072 = vmatpush1.msra.mxu0 %v1030
    %1073 = vmatprep.subr.mxu0 0.0
    %1074 = vmatpush2.msra.mxu0 0.0
    %1075 = vmatprep.subr.mxu0 0.0
    %1076 = vmatpush2.msra.mxu0 0.0
    %1077 = vmatprep.subr.mxu0 0.0
    %1078 = vmatpush2.msra.mxu0 0.0
    %1079 = vmatprep.subr.mxu0 0.0
    %1080 = vmatpush2.msra.mxu0 0.0
    %1081 = vmatprep.subr.mxu0 0.0
    %1082 = vmatpush2.msra.mxu0 0.0
    %1083 = vmatprep.subr.mxu0 0.0
    %1084 = vmatpush2.msra.mxu0 0.0
    %1085 = vmatprep.subr.mxu0 0.0
    %1086 = vmatpush2.msra.mxu0 0.0
    %1087 = vmatprep.subr.mxu0 0.0
    %1088 = vmatpush2.msra.mxu0 0.0
    %1089 = vmatprep.subr.mxu0 0.0
    %1090 = vmatpush2.msra.mxu0 0.0
    %1091 = vmatprep.subr.mxu0 0.0
    %1092 = vmatpush2.msra.mxu0 0.0
    %1093 = vmatprep.subr.mxu0 0.0
    %1094 = vmatpush2.msra.mxu0 0.0
    %1095 = vmatprep.subr.mxu0 0.0
    %1096 = vmatpush2.msra.mxu0 0.0
    %1097 = vmatprep.subr.mxu0 0.0
    %1098 = vmatpush2.msra.mxu0 0.0
    %1099 = vmatprep.subr.mxu0 0.0
    %1100 = vmatpush2.msra.mxu0 0.0
    %1101 = vmatprep.subr.mxu0 0.0
    %1102 = vmatpush2.msra.mxu0 0.0
    %1103 = vmatprep.subr.mxu0 0.0
    %1104 = vmatpush2.msra.mxu0 0.0
    %1105 = vmatprep.mubr.f32.mxu0 0.0
    %1106 = vmatmul.mubr.f32.gmra.mxu0 %v315
    %v1107 = vpop.f32.mrf.mxu0
    %v1108 = vadd.f32 0.0, %v1107
    %v1109 = vpop.f32.mrf.mxu0
    %1110 = vmatprep.mubr.f32.mxu0 0.0
    %1111 = vmatmul.mubr.f32.gmra.mxu0 %v318
    %v1112 = vpop.f32.mrf.mxu0
    %v1113 = vadd.f32 0.0, %v1112
    %v1114 = vpop.f32.mrf.mxu0
    %1115 = vmatprep.mubr.f32.mxu0 0.0
    %1116 = vmatmul.mubr.f32.gmra.mxu0 %v321
    %v1117 = vpop.f32.mrf.mxu0
    %v1118 = vadd.f32 0.0, %v1117
    %v1119 = vpop.f32.mrf.mxu0
    %1120 = vdwg.mxu0
    %v1121 = vsub.f32 %v1108, %v957
    %v1122 = vsub.f32 %v1113, %v958
    %v1123 = vsub.f32 %v1118, %v959
    %v1125 = vsel %vm415, %v1121, 0
    %v1128 = vsel %vm415, %v1122, 0
    %v1131 = vsel %vm415, %v1123, 0
    %1133 = vmatprep.subr.mxu0 0.0
    %1134 = vmatpush1.msra.mxu0 0.0
    %1135 = vmatprep.subr.mxu0 0.0
    %1136 = vmatpush1.msra.mxu0 0.0
    %1137 = vmatprep.subr.mxu0 0.0
    %1138 = vmatpush1.msra.mxu0 0.0
    %1139 = vmatprep.subr.mxu0 0.0
    %1140 = vmatpush1.msra.mxu0 0.0
    %1141 = vmatprep.subr.mxu0 0.0
    %1142 = vmatpush1.msra.mxu0 0.0
    %1143 = vmatprep.subr.mxu0 0.0
    %1144 = vmatpush1.msra.mxu0 0.0
    %1145 = vmatprep.subr.mxu0 0.0
    %1146 = vmatpush1.msra.mxu0 0.0
    %1147 = vmatprep.subr.mxu0 0.0
    %1148 = vmatpush1.msra.mxu0 0.0
    %1149 = vmatprep.subr.mxu0 0.0
    %1150 = vmatpush1.msra.mxu0 0.0
    %1151 = vmatprep.subr.mxu0 0.0
    %1152 = vmatpush1.msra.mxu0 0.0
    %1153 = vmatprep.subr.mxu0 0.0
    %1154 = vmatpush1.msra.mxu0 0.0
    %1155 = vmatprep.subr.mxu0 0.0
    %1156 = vmatpush1.msra.mxu0 0.0
    %1157 = vmatprep.subr.mxu0 0.0
    %1158 = vmatpush1.msra.mxu0 %v111
    %1159 = vmatprep.subr.mxu0 0.0
    %1160 = vmatpush1.msra.mxu0 %v110
    %1161 = vmatprep.subr.mxu0 0.0
    %1162 = vmatpush1.msra.mxu0 %v109
    %1163 = vmatprep.subr.mxu0 0.0
    %1164 = vmatpush1.msra.mxu0 %v108
    %1165 = vmatprep.subr.mxu0 0.0
    %1166 = vmatpush2.msra.mxu0 0.0
    %1167 = vmatprep.subr.mxu0 0.0
    %1168 = vmatpush2.msra.mxu0 0.0
    %1169 = vmatprep.subr.mxu0 0.0
    %1170 = vmatpush2.msra.mxu0 0.0
    %1171 = vmatprep.subr.mxu0 0.0
    %1172 = vmatpush2.msra.mxu0 0.0
    %1173 = vmatprep.subr.mxu0 0.0
    %1174 = vmatpush2.msra.mxu0 0.0
    %1175 = vmatprep.subr.mxu0 0.0
    %1176 = vmatpush2.msra.mxu0 0.0
    %1177 = vmatprep.subr.mxu0 0.0
    %1178 = vmatpush2.msra.mxu0 0.0
    %1179 = vmatprep.subr.mxu0 0.0
    %1180 = vmatpush2.msra.mxu0 0.0
    %1181 = vmatprep.subr.mxu0 0.0
    %1182 = vmatpush2.msra.mxu0 0.0
    %1183 = vmatprep.subr.mxu0 0.0
    %1184 = vmatpush2.msra.mxu0 0.0
    %1185 = vmatprep.subr.mxu0 0.0
    %1186 = vmatpush2.msra.mxu0 0.0
    %1187 = vmatprep.subr.mxu0 0.0
    %1188 = vmatpush2.msra.mxu0 0.0
    %1189 = vmatprep.subr.mxu0 0.0
    %1190 = vmatpush2.msra.mxu0 0.0
    %1191 = vmatprep.subr.mxu0 0.0
    %1192 = vmatpush2.msra.mxu0 0.0
    %1193 = vmatprep.subr.mxu0 0.0
    %1194 = vmatpush2.msra.mxu0 0.0
    %1195 = vmatprep.subr.mxu0 0.0
    %1196 = vmatpush2.msra.mxu0 0.0
    %1197 = vmatprep.mubr.f32.mxu0 0.0
    %1198 = vmatmul.mubr.f32.gmra.mxu0 %v1125
    %v1199 = vpop.f32.mrf.mxu0
    %v1200 = vadd.f32 %v413, %v1199
    %v1201 = vpop.f32.mrf.mxu0
    %1202 = vmatprep.mubr.f32.mxu0 0.0
    %1203 = vmatmul.mubr.f32.gmra.mxu0 %v1128
    %v1204 = vpop.f32.mrf.mxu0
    %v1205 = vadd.f32 %v413, %v1204
    %v1206 = vpop.f32.mrf.mxu0
    %1207 = vmatprep.mubr.f32.mxu0 0.0
    %1208 = vmatmul.mubr.f32.gmra.mxu0 %v1131
    %v1209 = vpop.f32.mrf.mxu0
    %v1210 = vadd.f32 %v413, %v1209
    %v1211 = vpop.f32.mrf.mxu0
    %1212 = vdwg.mxu0
    %v1213 = vmax.f32 %v1200, 0.0
    %v1214 = vmax.f32 %v1205, 0.0
    %v1215 = vmax.f32 %v1210, 0.0
    %v1217 = vsel %vm415, %v1213, 0
    %v1220 = vsel %vm415, %v1214, 0
    %v1223 = vsel %vm415, %v1215, 0
    %1225 = vmatprep.subr.mxu0 0.0
    %1226 = vmatpush1.msra.mxu0 0.0
    %1227 = vmatprep.subr.mxu0 0.0
    %1228 = vmatpush1.msra.mxu0 0.0
    %1229 = vmatprep.subr.mxu0 0.0
    %1230 = vmatpush1.msra.mxu0 0.0
    %1231 = vmatprep.subr.mxu0 0.0
    %1232 = vmatpush1.msra.mxu0 0.0
    %1233 = vmatprep.subr.mxu0 0.0
    %1234 = vmatpush1.msra.mxu0 0.0
    %1235 = vmatprep.subr.mxu0 0.0
    %1236 = vmatpush1.msra.mxu0 0.0
    %1237 = vmatprep.subr.mxu0 0.0
    %1238 = vmatpush1.msra.mxu0 0.0
    %1239 = vmatprep.subr.mxu0 0.0
    %1240 = vmatpush1.msra.mxu0 0.0
    %1241 = vmatprep.subr.mxu0 0.0
    %1242 = vmatpush1.msra.mxu0 0.0
    %1243 = vmatprep.subr.mxu0 0.0
    %1244 = vmatpush1.msra.mxu0 0.0
    %1245 = vmatprep.subr.mxu0 0.0
    %1246 = vmatpush1.msra.mxu0 0.0
    %1247 = vmatprep.subr.mxu0 0.0
    %1248 = vmatpush1.msra.mxu0 0.0
    %1249 = vmatprep.subr.mxu0 0.0
    %1250 = vmatpush1.msra.mxu0 %v115
    %1251 = vmatprep.subr.mxu0 0.0
    %1252 = vmatpush1.msra.mxu0 %v114
    %1253 = vmatprep.subr.mxu0 0.0
    %1254 = vmatpush1.msra.mxu0 %v113
    %1255 = vmatprep.subr.mxu0 0.0
    %1256 = vmatpush1.msra.mxu0 %v112
    %1257 = vmatprep.subr.mxu0 0.0
    %1258 = vmatpush2.msra.mxu0 0.0
    %1259 = vmatprep.subr.mxu0 0.0
    %1260 = vmatpush2.msra.mxu0 0.0
    %1261 = vmatprep.subr.mxu0 0.0
    %1262 = vmatpush2.msra.mxu0 0.0
    %1263 = vmatprep.subr.mxu0 0.0
    %1264 = vmatpush2.msra.mxu0 0.0
    %1265 = vmatprep.subr.mxu0 0.0
    %1266 = vmatpush2.msra.mxu0 0.0
    %1267 = vmatprep.subr.mxu0 0.0
    %1268 = vmatpush2.msra.mxu0 0.0
    %1269 = vmatprep.subr.mxu0 0.0
    %1270 = vmatpush2.msra.mxu0 0.0
    %1271 = vmatprep.subr.mxu0 0.0
    %1272 = vmatpush2.msra.mxu0 0.0
    %1273 = vmatprep.subr.mxu0 0.0
    %1274 = vmatpush2.msra.mxu0 0.0
    %1275 = vmatprep.subr.mxu0 0.0
    %1276 = vmatpush2.msra.mxu0 0.0
    %1277 = vmatprep.subr.mxu0 0.0
    %1278 = vmatpush2.msra.mxu0 0.0
    %1279 = vmatprep.subr.mxu0 0.0
    %1280 = vmatpush2.msra.mxu0 0.0
    %1281 = vmatprep.subr.mxu0 0.0
    %1282 = vmatpush2.msra.mxu0 0.0
    %1283 = vmatprep.subr.mxu0 0.0
    %1284 = vmatpush2.msra.mxu0 0.0
    %1285 = vmatprep.subr.mxu0 0.0
    %1286 = vmatpush2.msra.mxu0 0.0
    %1287 = vmatprep.subr.mxu0 0.0
    %1288 = vmatpush2.msra.mxu0 0.0
    %1289 = vmatprep.mubr.f32.mxu0 0.0
    %1290 = vmatmul.mubr.f32.gmra.mxu0 %v1217
    %v1291 = vpop.f32.mrf.mxu0
    %v1292 = vadd.f32 %v512, %v1291
    %v1293 = vpop.f32.mrf.mxu0
    %1294 = vmatprep.mubr.f32.mxu0 0.0
    %1295 = vmatmul.mubr.f32.gmra.mxu0 %v1220
    %v1296 = vpop.f32.mrf.mxu0
    %v1297 = vadd.f32 %v512, %v1296
    %v1298 = vpop.f32.mrf.mxu0
    %1299 = vmatprep.mubr.f32.mxu0 0.0
    %1300 = vmatmul.mubr.f32.gmra.mxu0 %v1223
    %v1301 = vpop.f32.mrf.mxu0
    %v1302 = vadd.f32 %v512, %v1301
    %v1303 = vpop.f32.mrf.mxu0
    %1304 = vdwg.mxu0
    %v1305 = vadd.f32 %v224, %v1292
    %v1306 = vadd.f32 %v225, %v1297
    %v1307 = vadd.f32 %v226, %v1302
    %v1308 = vmax.f32 %v1305, 0.0
    %v1309 = vmax.f32 %v1306, 0.0
    %v1310 = vmax.f32 %v1307, 0.0
    %v1312 = vsel %vm227, %v106, 0
    %v1315 = vsel %vm227, %v107, 0
    %v1318 = vsel %vm234, %v1310, 0
    %1320 = vmatprep.subr.mxu0 0.0
    %1321 = vmatpush1.msra.mxu0 0.0
    %1322 = vmatprep.subr.mxu0 0.0
    %1323 = vmatpush1.msra.mxu0 0.0
    %1324 = vmatprep.subr.mxu0 0.0
    %1325 = vmatpush1.msra.mxu0 0.0
    %1326 = vmatprep.subr.mxu0 0.0
    %1327 = vmatpush1.msra.mxu0 0.0
    %1328 = vmatprep.subr.mxu0 0.0
    %1329 = vmatpush1.msra.mxu0 0.0
    %1330 = vmatprep.subr.mxu0 0.0
    %1331 = vmatpush1.msra.mxu0 0.0
    %1332 = vmatprep.subr.mxu0 0.0
    %1333 = vmatpush1.msra.mxu0 0.0
    %1334 = vmatprep.subr.mxu0 0.0
    %1335 = vmatpush1.msra.mxu0 0.0
    %1336 = vmatprep.subr.mxu0 0.0
    %1337 = vmatpush1.msra.mxu0 0.0
    %1338 = vmatprep.subr.mxu0 0.0
    %1339 = vmatpush1.msra.mxu0 0.0
    %1340 = vmatprep.subr.mxu0 0.0
    %1341 = vmatpush1.msra.mxu0 0.0
    %1342 = vmatprep.subr.mxu0 0.0
    %1343 = vmatpush1.msra.mxu0 0.0
    %1344 = vmatprep.subr.mxu0 0.0
    %1345 = vmatpush1.msra.mxu0 0.0
    %1346 = vmatprep.subr.mxu0 0.0
    %1347 = vmatpush1.msra.mxu0 %v1318
    %1348 = vmatprep.subr.mxu0 0.0
    %1349 = vmatpush1.msra.mxu0 %v1309
    %1350 = vmatprep.subr.mxu0 0.0
    %1351 = vmatpush1.msra.mxu0 %v1308
    %1352 = vmatprep.subr.mxu0 0.0
    %1353 = vmatpush2.msra.mxu0 0.0
    %1354 = vmatprep.subr.mxu0 0.0
    %1355 = vmatpush2.msra.mxu0 0.0
    %1356 = vmatprep.subr.mxu0 0.0
    %1357 = vmatpush2.msra.mxu0 0.0
    %1358 = vmatprep.subr.mxu0 0.0
    %1359 = vmatpush2.msra.mxu0 0.0
    %1360 = vmatprep.subr.mxu0 0.0
    %1361 = vmatpush2.msra.mxu0 0.0
    %1362 = vmatprep.subr.mxu0 0.0
    %1363 = vmatpush2.msra.mxu0 0.0
    %1364 = vmatprep.subr.mxu0 0.0
    %1365 = vmatpush2.msra.mxu0 0.0
    %1366 = vmatprep.subr.mxu0 0.0
    %1367 = vmatpush2.msra.mxu0 0.0
    %1368 = vmatprep.subr.mxu0 0.0
    %1369 = vmatpush2.msra.mxu0 0.0
    %1370 = vmatprep.subr.mxu0 0.0
    %1371 = vmatpush2.msra.mxu0 0.0
    %1372 = vmatprep.subr.mxu0 0.0
    %1373 = vmatpush2.msra.mxu0 0.0
    %1374 = vmatprep.subr.mxu0 0.0
    %1375 = vmatpush2.msra.mxu0 0.0
    %1376 = vmatprep.subr.mxu0 0.0
    %1377 = vmatpush2.msra.mxu0 0.0
    %1378 = vmatprep.subr.mxu0 0.0
    %1379 = vmatpush2.msra.mxu0 0.0
    %1380 = vmatprep.subr.mxu0 0.0
    %1381 = vmatpush2.msra.mxu0 0.0
    %1382 = vmatprep.subr.mxu0 0.0
    %1383 = vmatpush2.msra.mxu0 0.0
    %1384 = vmatprep.mubr.f32.mxu0 0.0
    %1385 = vmatmul.mubr.f32.gmra.mxu0 %v1312
    %v1386 = vpop.f32.mrf.mxu0
    %v1387 = vadd.f32 0.0, %v1386
    %v1388 = vpop.f32.mrf.mxu0
    %1389 = vmatprep.mubr.f32.mxu0 0.0
    %1390 = vmatmul.mubr.f32.gmra.mxu0 %v1315
    %v1391 = vpop.f32.mrf.mxu0
    %v1392 = vadd.f32 0.0, %v1391
    %v1393 = vpop.f32.mrf.mxu0
    %1394 = vdwg.mxu0
    %v1395 = vld [vmem:[%s1] sm:$0xff]
    %v1396 = vld [vmem:[%s1 + $0x8] sm:$0xf]
    %v1397 = vld [vmem:[%s12] sm:$0xff]
    %v1398 = vld [vmem:[%s13] sm:$0xff]
    %v1399 = vld [vmem:[%s13 + $0x8] sm:$0xff]
    %v1400 = vld [vmem:[%s13 + $0x10] sm:$0xff]
    %v1401 = vld [vmem:[%s13 + $0x18] sm:$0xff]
    %v1403 = vsel %vm415, %v1387, 0
    %v1406 = vsel %vm415, %v1392, 0
    %1408 = vmatprep.subr.mxu0 0.0
    %1409 = vmatpush1.msra.mxu0 0.0
    %1410 = vmatprep.subr.mxu0 0.0
    %1411 = vmatpush1.msra.mxu0 0.0
    %1412 = vmatprep.subr.mxu0 0.0
    %1413 = vmatpush1.msra.mxu0 0.0
    %1414 = vmatprep.subr.mxu0 0.0
    %1415 = vmatpush1.msra.mxu0 0.0
    %1416 = vmatprep.subr.mxu0 0.0
    %1417 = vmatpush1.msra.mxu0 0.0
    %1418 = vmatprep.subr.mxu0 0.0
    %1419 = vmatpush1.msra.mxu0 0.0
    %1420 = vmatprep.subr.mxu0 0.0
    %1421 = vmatpush1.msra.mxu0 0.0
    %1422 = vmatprep.subr.mxu0 0.0
    %1423 = vmatpush1.msra.mxu0 0.0
    %1424 = vmatprep.subr.mxu0 0.0
    %1425 = vmatpush1.msra.mxu0 0.0
    %1426 = vmatprep.subr.mxu0 0.0
    %1427 = vmatpush1.msra.mxu0 0.0
    %1428 = vmatprep.subr.mxu0 0.0
    %1429 = vmatpush1.msra.mxu0 0.0
    %1430 = vmatprep.subr.mxu0 0.0
    %1431 = vmatpush1.msra.mxu0 0.0
    %1432 = vmatprep.subr.mxu0 0.0
    %1433 = vmatpush1.msra.mxu0 %v1401
    %1434 = vmatprep.subr.mxu0 0.0
    %1435 = vmatpush1.msra.mxu0 %v1400
    %1436 = vmatprep.subr.mxu0 0.0
    %1437 = vmatpush1.msra.mxu0 %v1399
    %1438 = vmatprep.subr.mxu0 0.0
    %1439 = vmatpush1.msra.mxu0 %v1398
    %1440 = vmatprep.subr.mxu0 0.0
    %1441 = vmatpush2.msra.mxu0 0.0
    %1442 = vmatprep.subr.mxu0 0.0
    %1443 = vmatpush2.msra.mxu0 0.0
    %1444 = vmatprep.subr.mxu0 0.0
    %1445 = vmatpush2.msra.mxu0 0.0
    %1446 = vmatprep.subr.mxu0 0.0
    %1447 = vmatpush2.msra.mxu0 0.0
    %1448 = vmatprep.subr.mxu0 0.0
    %1449 = vmatpush2.msra.mxu0 0.0
    %1450 = vmatprep.subr.mxu0 0.0
    %1451 = vmatpush2.msra.mxu0 0.0
    %1452 = vmatprep.subr.mxu0 0.0
    %1453 = vmatpush2.msra.mxu0 0.0
    %1454 = vmatprep.subr.mxu0 0.0
    %1455 = vmatpush2.msra.mxu0 0.0
    %1456 = vmatprep.subr.mxu0 0.0
    %1457 = vmatpush2.msra.mxu0 0.0
    %1458 = vmatprep.subr.mxu0 0.0
    %1459 = vmatpush2.msra.mxu0 0.0
    %1460 = vmatprep.subr.mxu0 0.0
    %1461 = vmatpush2.msra.mxu0 0.0
    %1462 = vmatprep.subr.mxu0 0.0
    %1463 = vmatpush2.msra.mxu0 0.0
    %1464 = vmatprep.subr.mxu0 0.0
    %1465 = vmatpush2.msra.mxu0 0.0
    %1466 = vmatprep.subr.mxu0 0.0
    %1467 = vmatpush2.msra.mxu0 0.0
    %1468 = vmatprep.subr.mxu0 0.0
    %1469 = vmatpush2.msra.mxu0 0.0
    %1470 = vmatprep.subr.mxu0 0.0
    %1471 = vmatpush2.msra.mxu0 0.0
    %1472 = vmatprep.mubr.f32.mxu0 0.0
    %1473 = vmatmul.mubr.f32.gmra.mxu0 %v1403
    %v1474 = vpop.f32.mrf.mxu0
    %v1475 = vadd.f32 0.0, %v1474
    %v1476 = vpop.f32.mrf.mxu0
    %1477 = vmatprep.mubr.f32.mxu0 0.0
    %1478 = vmatmul.mubr.f32.gmra.mxu0 %v1406
    %v1479 = vpop.f32.mrf.mxu0
    %v1480 = vadd.f32 0.0, %v1479
    %v1481 = vpop.f32.mrf.mxu0
    %1482 = vdwg.mxu0
    %vm1483 = vcmask 64512
    %v1485 = vsel %vm1483, %v1395, 0
    %v1488 = vsel %vm1483, %v1396, 0
    %1490 = vmatprep.subr.mxu0 0.0
    %1491 = vmatpush1.msra.mxu0 0.0
    %1492 = vmatprep.subr.mxu0 0.0
    %1493 = vmatpush1.msra.mxu0 0.0
    %1494 = vmatprep.subr.mxu0 0.0
    %1495 = vmatpush1.msra.mxu0 0.0
    %1496 = vmatprep.subr.mxu0 0.0
    %1497 = vmatpush1.msra.mxu0 0.0
    %1498 = vmatprep.subr.mxu0 0.0
    %1499 = vmatpush1.msra.mxu0 0.0
    %1500 = vmatprep.subr.mxu0 0.0
    %1501 = vmatpush1.msra.mxu0 0.0
    %1502 = vmatprep.subr.mxu0 0.0
    %1503 = vmatpush1.msra.mxu0 0.0
    %1504 = vmatprep.subr.mxu0 0.0
    %1505 = vmatpush1.msra.mxu0 0.0
    %1506 = vmatprep.subr.mxu0 0.0
    %1507 = vmatpush1.msra.mxu0 0.0
    %1508 = vmatprep.subr.mxu0 0.0
    %1509 = vmatpush1.msra.mxu0 0.0
    %1510 = vmatprep.subr.mxu0 0.0
    %1511 = vmatpush1.msra.mxu0 0.0
    %1512 = vmatprep.subr.mxu0 0.0
    %1513 = vmatpush1.msra.mxu0 0.0
    %1514 = vmatprep.subr.mxu0 0.0
    %1515 = vmatpush1.msra.mxu0 0.0
    %1516 = vmatprep.subr.mxu0 0.0
    %1517 = vmatpush1.msra.mxu0 0.0
    %1518 = vmatprep.subr.mxu0 0.0
    %1519 = vmatpush1.msra.mxu0 0.0
    %1520 = vmatprep.subr.mxu0 0.0
    %1521 = vmatpush1.msra.mxu0 %v1397
    %1522 = vmatprep.subr.mxu0 0.0
    %1523 = vmatpush2.msra.mxu0 0.0
    %1524 = vmatprep.subr.mxu0 0.0
    %1525 = vmatpush2.msra.mxu0 0.0
    %1526 = vmatprep.subr.mxu0 0.0
    %1527 = vmatpush2.msra.mxu0 0.0
    %1528 = vmatprep.subr.mxu0 0.0
    %1529 = vmatpush2.msra.mxu0 0.0
    %1530 = vmatprep.subr.mxu0 0.0
    %1531 = vmatpush2.msra.mxu0 0.0
    %1532 = vmatprep.subr.mxu0 0.0
    %1533 = vmatpush2.msra.mxu0 0.0
    %1534 = vmatprep.subr.mxu0 0.0
    %1535 = vmatpush2.msra.mxu0 0.0
    %1536 = vmatprep.subr.mxu0 0.0
    %1537 = vmatpush2.msra.mxu0 0.0
    %1538 = vmatprep.subr.mxu0 0.0
    %1539 = vmatpush2.msra.mxu0 0.0
    %1540 = vmatprep.subr.mxu0 0.0
    %1541 = vmatpush2.msra.mxu0 0.0
    %1542 = vmatprep.subr.mxu0 0.0
    %1543 = vmatpush2.msra.mxu0 0.0
    %1544 = vmatprep.subr.mxu0 0.0
    %1545 = vmatpush2.msra.mxu0 0.0
    %1546 = vmatprep.subr.mxu0 0.0
    %1547 = vmatpush2.msra.mxu0 0.0
    %1548 = vmatprep.subr.mxu0 0.0
    %1549 = vmatpush2.msra.mxu0 0.0
    %1550 = vmatprep.subr.mxu0 0.0
    %1551 = vmatpush2.msra.mxu0 0.0
    %1552 = vmatprep.subr.mxu0 0.0
    %1553 = vmatpush2.msra.mxu0 0.0
    %1554 = vmatprep.mubr.f32.mxu0 0.0
    %1555 = vmatmul.mubr.f32.gmra.mxu0 %v1485
    %v1556 = vpop.f32.mrf.mxu0
    %v1557 = vadd.f32 %v1475, %v1556
    %v1558 = vpop.f32.mrf.mxu0
    %1559 = vmatprep.mubr.f32.mxu0 0.0
    %1560 = vmatmul.mubr.f32.gmra.mxu0 %v1488
    %v1561 = vpop.f32.mrf.mxu0
    %v1562 = vadd.f32 %v1480, %v1561
    %v1563 = vpop.f32.mrf.mxu0
    %1564 = vdwg.mxu0
    %v1565 = vld [vmem:[%s14] sm:$0x1]
    %v1567 = vlaneseq
    %v1568 = vshrl.u32 %v1567, 7
    %v1569 = vsub.s32 0, %v1568
    %v1570 = vrot.slane %v1565, %v1569
    %v1572 = vadd.f32 %v1557, %v1570
    %v1573 = vadd.f32 %v1562, %v1570
    %v1574 = vmax.f32 %v1572, 0.0
    %v1575 = vmax.f32 %v1573, 0.0
    %v1576 = vsel %vm415, %v1574, 0.0
    %1577 = vadd.xlane.f32.xlu0 %v1576
    %v1578 = vpop.xlane.xlu0 %1577
    %vm1579 = vcmask 257024
    %v1580 = vsel %vm1579, %v1575, 0.0
    %1581 = vadd.xlane.f32.xlu0 %v1580
    %v1582 = vpop.xlane.xlu0 %1581
    %v1583 = vrcp.pop 32.0
    %v1584 = vmul.f32 %v1578, %v1583
    %v1585 = vmul.f32 %v1582, %v1583
    %v1586 = vsub.f32 %v1574, %v1584
    %v1587 = vsub.f32 %v1575, %v1585
    %v1588 = vmul.f32 %v1586, %v1586
    %v1589 = vmul.f32 %v1587, %v1587
    %v1590 = vsel %vm415, %v1588, 0.0
    %1591 = vadd.xlane.f32.xlu0 %v1590
    %v1592 = vpop.xlane.xlu0 %1591
    %v1593 = vsel %vm1579, %v1589, 0.0
    %1594 = vadd.xlane.f32.xlu0 %v1593
    %v1595 = vpop.xlane.xlu0 %1594
    %v1596 = vmul.f32 %v1592, %v1583
    %v1597 = vmul.f32 %v1595, %v1583
    %v1598 = vadd.f32 %v1596, 1e-05
    %v1599 = vadd.f32 %v1597, 1e-05
    %v1600 = vrsqrt.pop %v1598
    %v1601 = vrsqrt.pop %v1599
    %v1602 = vmul.f32 %v1586, %v1600
    %v1603 = vmul.f32 %v1587, %v1601
    %v1604 = vld [vmem:[%s15] sm:$0x1]
    %v1606 = vlaneseq
    %v1607 = vshrl.u32 %v1606, 7
    %v1608 = vsub.s32 0, %v1607
    %v1609 = vrot.slane %v1604, %v1608
    %v1611 = vmul.f32 %v1602, %v1609
    %v1612 = vmul.f32 %v1603, %v1609
    %v1613 = vld [vmem:[%s16] sm:$0x1]
    %v1615 = vlaneseq
    %v1616 = vshrl.u32 %v1615, 7
    %v1617 = vsub.s32 0, %v1616
    %v1618 = vrot.slane %v1613, %v1617
    %v1620 = vadd.f32 %v1611, %v1618
    %v1621 = vadd.f32 %v1612, %v1618
    %v1622 = vmax.f32 %v1620, 0.0
    %v1623 = vmax.f32 %v1621, 0.0
    %v1624 = vld [vmem:[%s5] sm:$0x1]
    %v1625 = vlaneseq
    %v1626 = vshrl.u32 %v1625, 7
    %v1627 = vsub.s32 0, %v1626
    %v1628 = vrot.slane %v1624, %v1627
    %vm1629 = vcmp.eq.s32.totalorder %v63, %v1628
    %v1630 = vsel %vm1629, 1, 0
    %v1631 = vcvt.s32.f32 %v1630
    %vm1632 = vcmask 91136
    %v1633 = vsel %vm1632, %v1631, 0.0
    %1634 = vadd.xlane.f32.xlu0 %v1633
    %v1635 = vpop.xlane.xlu0 %1634
    %v1636 = vmax.f32 %v1635, 1.0
    %v1638 = vsel %vm313, %v1631, 0
    %v1641 = vsel %vm234, %v1623, 0
    %1643 = vmatprep.subr.mxu0 0.0
    %1644 = vmatpush1.msra.mxu0 0.0
    %1645 = vmatprep.subr.mxu0 0.0
    %1646 = vmatpush1.msra.mxu0 0.0
    %1647 = vmatprep.subr.mxu0 0.0
    %1648 = vmatpush1.msra.mxu0 0.0
    %1649 = vmatprep.subr.mxu0 0.0
    %1650 = vmatpush1.msra.mxu0 0.0
    %1651 = vmatprep.subr.mxu0 0.0
    %1652 = vmatpush1.msra.mxu0 0.0
    %1653 = vmatprep.subr.mxu0 0.0
    %1654 = vmatpush1.msra.mxu0 0.0
    %1655 = vmatprep.subr.mxu0 0.0
    %1656 = vmatpush1.msra.mxu0 0.0
    %1657 = vmatprep.subr.mxu0 0.0
    %1658 = vmatpush1.msra.mxu0 0.0
    %1659 = vmatprep.subr.mxu0 0.0
    %1660 = vmatpush1.msra.mxu0 0.0
    %1661 = vmatprep.subr.mxu0 0.0
    %1662 = vmatpush1.msra.mxu0 0.0
    %1663 = vmatprep.subr.mxu0 0.0
    %1664 = vmatpush1.msra.mxu0 0.0
    %1665 = vmatprep.subr.mxu0 0.0
    %1666 = vmatpush1.msra.mxu0 0.0
    %1667 = vmatprep.subr.mxu0 0.0
    %1668 = vmatpush1.msra.mxu0 0.0
    %1669 = vmatprep.subr.mxu0 0.0
    %1670 = vmatpush1.msra.mxu0 0.0
    %1671 = vmatprep.subr.mxu0 0.0
    %1672 = vmatpush1.msra.mxu0 %v1641
    %1673 = vmatprep.subr.mxu0 0.0
    %1674 = vmatpush1.msra.mxu0 %v1622
    %1675 = vmatprep.subr.mxu0 0.0
    %1676 = vmatpush2.msra.mxu0 0.0
    %1677 = vmatprep.subr.mxu0 0.0
    %1678 = vmatpush2.msra.mxu0 0.0
    %1679 = vmatprep.subr.mxu0 0.0
    %1680 = vmatpush2.msra.mxu0 0.0
    %1681 = vmatprep.subr.mxu0 0.0
    %1682 = vmatpush2.msra.mxu0 0.0
    %1683 = vmatprep.subr.mxu0 0.0
    %1684 = vmatpush2.msra.mxu0 0.0
    %1685 = vmatprep.subr.mxu0 0.0
    %1686 = vmatpush2.msra.mxu0 0.0
    %1687 = vmatprep.subr.mxu0 0.0
    %1688 = vmatpush2.msra.mxu0 0.0
    %1689 = vmatprep.subr.mxu0 0.0
    %1690 = vmatpush2.msra.mxu0 0.0
    %1691 = vmatprep.subr.mxu0 0.0
    %1692 = vmatpush2.msra.mxu0 0.0
    %1693 = vmatprep.subr.mxu0 0.0
    %1694 = vmatpush2.msra.mxu0 0.0
    %1695 = vmatprep.subr.mxu0 0.0
    %1696 = vmatpush2.msra.mxu0 0.0
    %1697 = vmatprep.subr.mxu0 0.0
    %1698 = vmatpush2.msra.mxu0 0.0
    %1699 = vmatprep.subr.mxu0 0.0
    %1700 = vmatpush2.msra.mxu0 0.0
    %1701 = vmatprep.subr.mxu0 0.0
    %1702 = vmatpush2.msra.mxu0 0.0
    %1703 = vmatprep.subr.mxu0 0.0
    %1704 = vmatpush2.msra.mxu0 0.0
    %1705 = vmatprep.subr.mxu0 0.0
    %1706 = vmatpush2.msra.mxu0 0.0
    %1707 = vmatprep.mubr.f32.mxu0 0.0
    %1708 = vmatmul.mubr.f32.gmra.mxu0 %v1638
    %v1709 = vpop.f32.mrf.mxu0
    %v1710 = vadd.f32 0.0, %v1709
    %v1711 = vpop.f32.mrf.mxu0
    %1712 = vdwg.mxu0
    %v1713 = vrcp.pop %v1636
    %v1714 = vmul.f32 %v1710, %v1713
    %v1715 = vld [vmem:[%s17] sm:$0xff]
    %v1716 = vld [vmem:[%s17 + $0x8] sm:$0xff]
    %v1717 = vld [vmem:[%s17 + $0x10] sm:$0xff]
    %v1718 = vld [vmem:[%s17 + $0x18] sm:$0xff]
    %v1720 = vsel %vm415, %v1714, 0
    %1722 = vmatprep.subr.mxu0 0.0
    %1723 = vmatpush1.msra.mxu0 0.0
    %1724 = vmatprep.subr.mxu0 0.0
    %1725 = vmatpush1.msra.mxu0 0.0
    %1726 = vmatprep.subr.mxu0 0.0
    %1727 = vmatpush1.msra.mxu0 0.0
    %1728 = vmatprep.subr.mxu0 0.0
    %1729 = vmatpush1.msra.mxu0 0.0
    %1730 = vmatprep.subr.mxu0 0.0
    %1731 = vmatpush1.msra.mxu0 0.0
    %1732 = vmatprep.subr.mxu0 0.0
    %1733 = vmatpush1.msra.mxu0 0.0
    %1734 = vmatprep.subr.mxu0 0.0
    %1735 = vmatpush1.msra.mxu0 0.0
    %1736 = vmatprep.subr.mxu0 0.0
    %1737 = vmatpush1.msra.mxu0 0.0
    %1738 = vmatprep.subr.mxu0 0.0
    %1739 = vmatpush1.msra.mxu0 0.0
    %1740 = vmatprep.subr.mxu0 0.0
    %1741 = vmatpush1.msra.mxu0 0.0
    %1742 = vmatprep.subr.mxu0 0.0
    %1743 = vmatpush1.msra.mxu0 0.0
    %1744 = vmatprep.subr.mxu0 0.0
    %1745 = vmatpush1.msra.mxu0 0.0
    %1746 = vmatprep.subr.mxu0 0.0
    %1747 = vmatpush1.msra.mxu0 %v1718
    %1748 = vmatprep.subr.mxu0 0.0
    %1749 = vmatpush1.msra.mxu0 %v1717
    %1750 = vmatprep.subr.mxu0 0.0
    %1751 = vmatpush1.msra.mxu0 %v1716
    %1752 = vmatprep.subr.mxu0 0.0
    %1753 = vmatpush1.msra.mxu0 %v1715
    %1754 = vmatprep.subr.mxu0 0.0
    %1755 = vmatpush2.msra.mxu0 0.0
    %1756 = vmatprep.subr.mxu0 0.0
    %1757 = vmatpush2.msra.mxu0 0.0
    %1758 = vmatprep.subr.mxu0 0.0
    %1759 = vmatpush2.msra.mxu0 0.0
    %1760 = vmatprep.subr.mxu0 0.0
    %1761 = vmatpush2.msra.mxu0 0.0
    %1762 = vmatprep.subr.mxu0 0.0
    %1763 = vmatpush2.msra.mxu0 0.0
    %1764 = vmatprep.subr.mxu0 0.0
    %1765 = vmatpush2.msra.mxu0 0.0
    %1766 = vmatprep.subr.mxu0 0.0
    %1767 = vmatpush2.msra.mxu0 0.0
    %1768 = vmatprep.subr.mxu0 0.0
    %1769 = vmatpush2.msra.mxu0 0.0
    %1770 = vmatprep.subr.mxu0 0.0
    %1771 = vmatpush2.msra.mxu0 0.0
    %1772 = vmatprep.subr.mxu0 0.0
    %1773 = vmatpush2.msra.mxu0 0.0
    %1774 = vmatprep.subr.mxu0 0.0
    %1775 = vmatpush2.msra.mxu0 0.0
    %1776 = vmatprep.subr.mxu0 0.0
    %1777 = vmatpush2.msra.mxu0 0.0
    %1778 = vmatprep.subr.mxu0 0.0
    %1779 = vmatpush2.msra.mxu0 0.0
    %1780 = vmatprep.subr.mxu0 0.0
    %1781 = vmatpush2.msra.mxu0 0.0
    %1782 = vmatprep.subr.mxu0 0.0
    %1783 = vmatpush2.msra.mxu0 0.0
    %1784 = vmatprep.subr.mxu0 0.0
    %1785 = vmatpush2.msra.mxu0 0.0
    %1786 = vmatprep.mubr.f32.mxu0 0.0
    %1787 = vmatmul.mubr.f32.gmra.mxu0 %v1720
    %v1788 = vpop.f32.mrf.mxu0
    %v1789 = vadd.f32 0.0, %v1788
    %v1790 = vpop.f32.mrf.mxu0
    %1791 = vdwg.mxu0
    %vm1792 = vcmask 25600
    %1793 = vst.msk [vmem:[#allocation2] sm:$0x3] %vm1792, %v1789
    // Predicated region
    $region74: #{tpu_custom_call.1} parent=1 // pred_check
      _
    $region75: #{tpu_custom_call.1} parent=1 // pred_check_branch
      %1795 = sbr.rel (0) target = $region77
    $region76: #{tpu_custom_call.1} parent=1 // pred_region
      %s1797 = ssub.s32 32, 32
      %1798 = vsyncadd [#allocation3], %s1797
      %s1800 = sshll.u32 [#allocation2], 4
      %s1801 = int_to_ptr.vmem [resolvable:$true] %s1800
      %1803 = dma.vmem_to_hbm [thread:$0]  %s1801, 32, %s18, [#allocation3]
    $region77: #{tpu_custom_call.1} parent=1 // pred_fallthru
      _
    // Predicated region
    $region78: #{tpu_custom_call.1} parent=1 // pred_check
      _
    $region79: #{tpu_custom_call.1} parent=1 // pred_check_branch
      %1805 = sbr.rel (0) target = $region81
    $region80: #{tpu_custom_call.1} parent=1 // pred_region
      %1806 = dma.done [#allocation3], 32
    $region81: #{tpu_custom_call.1} parent=1 // pred_fallthru
      _
    %1807 = vsyncpa [#allocation3], 1

</llo_original>
